<compile_context>
chip_gen: v7x
topology: tpu7x:2x2x1
jax: 0.10.0
libtpu: 0.0.40
codegen_flags: <defaults>
</compile_context>

<pallas_src>
import jax
import jax.numpy as jnp
from jax.experimental import pallas as pl
from jax.experimental.pallas import tpu as pltpu

# ---- module-consistent hyper-params ----
NDF = 8
NEF = 8
NDF_HALF = NDF // 2          # 4
CIN = NDF * 8                # 64   (ConvTranspose1d input channels)
CC = NDF_HALF + NEF          # 12   (concat channels)
L = 16                       # forward implies length 16 (c_code repeated to 16)
KT = 41                      # ConvTranspose1d kernel length
PAD_T = 20
KH = CIN * L                 # 1024 folded contraction dim for the x branch (MXU aligned)
NOUT = L * NDF_HALF          # 64   folded output width (lane-dense)
N_CONST_ROWS = 8             # constants buffer rows (padded, sublane-friendly)

MATMUL_DTYPE = jnp.bfloat16  # bf16 operands for the big matmul, f32 accumulation


def d_get_logits_kernel(x_ref, c_ref, wh_ref, wc_ref, consts_ref, out_ref):
    # constants buffer rows: 0=b_pre, 1=gamma (tiled), 2=beta (tiled), 3=wf row, 4=bf
    b_pre = consts_ref[0:1, :]                                           # (1, 64)
    gamma = consts_ref[1:2, :]                                           # (1, 64)
    beta = consts_ref[2:3, :]                                            # (1, 64)
    wf_row = consts_ref[3:4, :]                                          # (1, 64)
    bf = consts_ref[4:5, 0:1]                                            # (1, 1)

    # --- folded ConvT(41) + concat(c) + Conv1d(k=3): two lane-dense MXU matmuls ---
    x = x_ref[...].astype(MATMUL_DTYPE)                                  # (B, 1024) bf16
    c = c_ref[...].astype(MATMUL_DTYPE)                                  # (B, 8)    bf16
    h2 = (jnp.dot(x, wh_ref[...], preferred_element_type=jnp.float32)
          + jnp.dot(c, wc_ref[...], preferred_element_type=jnp.float32)
          + b_pre)                                                       # (B, 64) f32

    # --- BatchNorm1d, training-mode batch stats over (batch, time), per channel ---
    # column layout is t*NDF_HALF + ch; per-channel sums via one stacked selector dot
    n = jnp.float32(h2.shape[0] * L)
    col_stats = jnp.concatenate(
        [jnp.sum(h2, axis=0, keepdims=True),
         jnp.sum(h2 * h2, axis=0, keepdims=True)], axis=0)               # (2, 64)

    # in-kernel 0/1 selectors (no DMA): sel[j, ch] = 1 iff j % NDF_HALF == ch
    sel = (jax.lax.broadcasted_iota(jnp.int32, (NOUT, NDF_HALF), 0) % NDF_HALF
           == jax.lax.broadcasted_iota(jnp.int32, (NOUT, NDF_HALF), 1)
           ).astype(jnp.float32)                                         # (64, 4)
    selt = (jax.lax.broadcasted_iota(jnp.int32, (NDF_HALF, NOUT), 1) % NDF_HALF
            == jax.lax.broadcasted_iota(jnp.int32, (NDF_HALF, NOUT), 0)
            ).astype(jnp.float32)                                        # (4, 64)

    ch_stats = jnp.dot(col_stats, sel,
                       precision=jax.lax.Precision.HIGHEST,
                       preferred_element_type=jnp.float32)               # (2, 4)
    mean = ch_stats[0:1, :] / n
    var = ch_stats[1:2, :] / n - mean * mean                             # biased (PyTorch BN)
    inv = jax.lax.rsqrt(var + 1e-5)
    stats_b = jnp.dot(jnp.concatenate([mean, inv], axis=0), selt,
                      precision=jax.lax.Precision.HIGHEST,
                      preferred_element_type=jnp.float32)                # (2, 64)
    mean_b = stats_b[0:1, :]
    inv_b = stats_b[1:2, :]

    scale = inv_b * gamma
    shift = beta - mean_b * scale
    h2 = h2 * scale + shift

    # --- LeakyReLU(0.2) ---
    h2 = jnp.where(h2 > 0, h2, 0.2 * h2)

    # --- Conv1d(4, 1, k=16, stride=4) over length 16 -> one position ---
    # VPU multiply + cross-lane reduce instead of an N=1 MXU dot.
    logit = jnp.sum(h2 * wf_row, axis=-1, keepdims=True) + bf            # (B, 1)
    out_ref[...] = jax.nn.sigmoid(logit)


def init_params(key):
    ks = jax.random.split(key, 5)
    return dict(
        # ConvTranspose1d weight layout: (in_channels, out_channels, K)
        wT=jax.random.normal(ks[0], (CIN, NDF_HALF, KT), jnp.float32) * 0.05,
        bT=jax.random.normal(ks[1], (NDF_HALF,), jnp.float32) * 0.05,
        # Conv1d(k=3) weight layout: (out_channels, in_channels, K), bias=False
        w3=jax.random.normal(ks[2], (NDF_HALF, CC, 3), jnp.float32) * 0.1,
        # BatchNorm affine params (PyTorch default init)
        gamma=jnp.ones((NDF_HALF,), jnp.float32),
        beta=jnp.zeros((NDF_HALF,), jnp.float32),
        # Conv1d(k=16) weight layout: (1, in_channels, K)
        wf=jax.random.normal(ks[3], (1, NDF_HALF, L), jnp.float32) * 0.1,
        bf=jax.random.normal(ks[4], (1,), jnp.float32) * 0.1,
    )


def precompute_folded_params(params):
    """One-time fold of ConvTranspose1d(k=41,pad=20) + concat(c_rep) + Conv1d(k=3,pad=1)
    into a split affine map plus a packed constants buffer:
        h2[b, t*4+p] = x_flat[b, :] @ W_h + c[b, :] @ W_c + b_pre
    with x_flat = h_code.reshape(B, CIN*L)  (row index c*L + s, i.e. the activation
    transpose is folded into the weight permutation)."""
    W = params['wT']                  # (CIN, 4, 41)
    bT = params['bT']                 # (4,)
    W3 = params['w3']                 # (4, 12, 3)

    s_idx = jnp.arange(L)
    t_idx = jnp.arange(L)

    # ConvTranspose (stride=1, pad=20): y[o,tt] = sum_{c,s} x[c,s] * W[c,o, tt - s + 20]
    # A[c, o, s, tt] = W[c, o, tt + 20 - s]   (indices always inside [5, 35])
    gather_idx = t_idx[None, :] + PAD_T - s_idx[:, None]                 # (s, tt)
    A = W[:, :, gather_idx]                                              # (CIN, 4, L, L)

    # Conv1d(k=3, pad=1): B3[p, o, tt, t] = W3[p, o, tt - t + 1] if tap valid, else 0
    k_rel = t_idx[:, None] - t_idx[None, :] + 1                          # (tt, t)
    valid = (k_rel >= 0) & (k_rel <= 2)
    B3 = jnp.where(valid[None, None],
                   W3[:, :NDF_HALF, :][:, :, jnp.clip(k_rel, 0, 2)], 0.0)  # (4, 4, L, L)

    # h-branch: rows indexed c*L + s (matches reshape of NCW h_code), cols t*4 + p
    W_h = jnp.einsum('cosu,pout->cstp', A, B3).reshape(CIN * L, NOUT)    # (1024, 64)

    # c-branch: c_rep is time-invariant -> collapses to a sum over the valid k=3 taps
    taps = t_idx[:, None] + jnp.arange(3)[None, :] - 1                   # (t, k)
    valid_k = ((taps >= 0) & (taps < L)).astype(jnp.float32)
    W_c = jnp.einsum('pek,tk->etp', W3[:, NDF_HALF:, :], valid_k).reshape(NEF, NOUT)  # (8, 64)

    # ConvTranspose bias pushed through the k=3 conv
    b_pre = jnp.einsum('o,pout->tp', bT, B3).reshape(NOUT)               # (64,)

    # final Conv1d(k=16) weight in lane-dense layout: wf_row[t*4+c] = Wf[0, c, t]
    wf_row = jnp.transpose(params['wf'][0], (1, 0)).reshape(NOUT)        # (64,)

    consts = jnp.zeros((N_CONST_ROWS, NOUT), jnp.float32)
    consts = consts.at[0].set(b_pre)
    consts = consts.at[1].set(jnp.tile(params['gamma'], L))
    consts = consts.at[2].set(jnp.tile(params['beta'], L))
    consts = consts.at[3].set(wf_row)
    consts = consts.at[4].set(jnp.full((NOUT,), params['bf'][0], jnp.float32))

    return dict(wh=W_h.astype(MATMUL_DTYPE),       # (1024, 64) bf16
                wc=W_c.astype(MATMUL_DTYPE),       # (8, 64)    bf16
                consts=consts)                     # (8, 64)    f32


def d_get_logits_forward(folded, h_code, c_code):
    """folded: output of precompute_folded_params (cached per step);
    h_code: (B, NDF*8, 16) NCW; c_code: (B, NEF).  Returns (B,)."""
    B = h_code.shape[0]

    # free row-major flatten of the natural NCW layout (index c*L + s)
    x_flat = h_code.astype(jnp.float32).reshape(B, CIN * L)              # (B, 1024)
    c_in = c_code.astype(jnp.float32)                                    # (B, 8)

    vmem = pl.BlockSpec(memory_space=pltpu.MemorySpace.VMEM)

    flops = int(2 * B * KH * NOUT + 2 * B * NEF * NOUT
                + 2 * 2 * NOUT * NDF_HALF * 2 + 10 * B * NOUT)
    bytes_accessed = int(
        x_flat.size * 4 + c_in.size * 4
        + folded['wh'].size * 2 + folded['wc'].size * 2
        + folded['consts'].size * 4 + B * 4)

    # NOTE: BatchNorm uses whole-batch statistics -> single (gridless) invocation.
    # For very large B, raise vmem_limit_bytes or add a batch grid + two-pass BN.
    out = pl.pallas_call(
        d_get_logits_kernel,
        out_shape=jax.ShapeDtypeStruct((B, 1), jnp.float32),
        in_specs=[vmem, vmem, vmem, vmem, vmem],
        out_specs=vmem,
        cost_estimate=pl.CostEstimate(flops=flops,
                                      transcendentals=int(B + NDF_HALF),
                                      bytes_accessed=bytes_accessed),
    )(x_flat, c_in, folded['wh'], folded['wc'], folded['consts'])

    return out.reshape(-1)   # matches PyTorch output.view(-1): shape (B,)


def reference_forward(params, h_code, c_code):
    """Plain-JAX f32 reference mirroring the PyTorch module op-by-op (for validation)."""
    B = h_code.shape[0]
    hp = jax.lax.Precision.HIGHEST
    x = jnp.transpose(h_code, (0, 2, 1)).astype(jnp.float32)             # (B, L, CIN)
    xpad = jnp.pad(x, ((0, 0), (PAD_T, PAD_T), (0, 0)))
    wT_eff = jnp.transpose(params['wT'][:, :, ::-1], (2, 0, 1))          # (41, CIN, 4)
    h = jnp.zeros((B, L, NDF_HALF), jnp.float32)
    for k in range(KT):
        h = h + jnp.einsum('blc,co->blo', xpad[:, k:k + L, :], wT_eff[k], precision=hp)
    h = h + params['bT'][None, None, :]
    c_rep = jnp.broadcast_to(c_code[:, None, :].astype(jnp.float32), (B, L, NEF))
    hc = jnp.concatenate([h, c_rep], axis=2)                             # (B, L, 12)
    hcp = jnp.pad(hc, ((0, 0), (1, 1), (0, 0)))
    w3_eff = jnp.transpose(params['w3'], (2, 1, 0))                      # (3, 12, 4)
    y = jnp.zeros((B, L, NDF_HALF), jnp.float32)
    for k in range(3):
        y = y + jnp.einsum('blc,co->blo', hcp[:, k:k + L, :], w3_eff[k], precision=hp)
    mean = jnp.mean(y, axis=(0, 1), keepdims=True)
    var = jnp.mean((y - mean) ** 2, axis=(0, 1), keepdims=True)
    y = (y - mean) * jax.lax.rsqrt(var + 1e-5)
    y = y * params['gamma'][None, None, :] + params['beta'][None, None, :]
    y = jnp.where(y > 0, y, 0.2 * y)
    wf = jnp.transpose(params['wf'][0], (1, 0))                          # (L, 4)
    logit = jnp.sum(y * wf[None], axis=(1, 2)) + params['bf'][0]
    return jax.nn.sigmoid(logit)


if __name__ == "__main__":
    key = jax.random.PRNGKey(0)
    kp, kh, kc = jax.random.split(key, 3)
    params = init_params(kp)

    B = 2
    h_code = jax.random.normal(kh, (B, CIN, L), jnp.float32)   # (2, 64, 16)
    c_code = jax.random.normal(kc, (B, NEF), jnp.float32)      # (2, 8)

    # one-time precompute of folded weights / packed constants (cached across calls)
    folded = jax.tree_util.tree_map(jax.block_until_ready,
                                    precompute_folded_params(params))

    out = jax.block_until_ready(d_get_logits_forward(folded, h_code, c_code))
    ref = jax.block_until_ready(reference_forward(params, h_code, c_code))

    assert out.shape == (B,)
    assert bool(jnp.all(jnp.isfinite(out)))
    max_err = float(jnp.max(jnp.abs(out - ref)))
    assert max_err < 5e-2, f"kernel/reference mismatch: max abs err = {max_err}"
    print("KERNEL_OK")
</pallas_src>

<mosaic_0001>
module attributes {stable_mosaic.version = 11 : i64} {
  func.func @d_get_logits_kernel(%arg0: memref<2x1024xf32, #tpu.memory_space<vmem>>, %arg1: memref<2x8xf32, #tpu.memory_space<vmem>>, %arg2: memref<1024x64xbf16, #tpu.memory_space<vmem>>, %arg3: memref<8x64xbf16, #tpu.memory_space<vmem>>, %arg4: memref<8x64xf32, #tpu.memory_space<vmem>>, %arg5: memref<2x1xf32, #tpu.memory_space<vmem>>) attributes {dimension_semantics = [], scalar_prefetch = 0 : i64, scratch_operands = 0 : i64, tpu.core_type = #tpu.core_type<tc>} {
    %c0 = arith.constant 0 : index
    %c0_0 = arith.constant 0 : index
    %0 = vector.load %arg4[%c0, %c0_0] : memref<8x64xf32, #tpu.memory_space<vmem>>, vector<1x64xf32>
    %c1 = arith.constant 1 : index
    %c0_1 = arith.constant 0 : index
    %1 = vector.load %arg4[%c1, %c0_1] : memref<8x64xf32, #tpu.memory_space<vmem>>, vector<1x64xf32>
    %c2 = arith.constant 2 : index
    %c0_2 = arith.constant 0 : index
    %2 = vector.load %arg4[%c2, %c0_2] : memref<8x64xf32, #tpu.memory_space<vmem>>, vector<1x64xf32>
    %c3 = arith.constant 3 : index
    %c0_3 = arith.constant 0 : index
    %3 = vector.load %arg4[%c3, %c0_3] : memref<8x64xf32, #tpu.memory_space<vmem>>, vector<1x64xf32>
    %c4 = arith.constant 4 : index
    %c0_4 = arith.constant 0 : index
    %4 = vector.load %arg4[%c4, %c0_4] : memref<8x64xf32, #tpu.memory_space<vmem>>, vector<1x1xf32>
    %c0_5 = arith.constant 0 : index
    %c0_6 = arith.constant 0 : index
    %5 = vector.load %arg0[%c0_5, %c0_6] : memref<2x1024xf32, #tpu.memory_space<vmem>>, vector<2x1024xf32>
    %6 = arith.truncf %5 : vector<2x1024xf32> to vector<2x1024xbf16>
    %c0_7 = arith.constant 0 : index
    %c0_8 = arith.constant 0 : index
    %7 = vector.load %arg1[%c0_7, %c0_8] : memref<2x8xf32, #tpu.memory_space<vmem>>, vector<2x8xf32>
    %8 = arith.truncf %7 : vector<2x8xf32> to vector<2x8xbf16>
    %c0_9 = arith.constant 0 : index
    %c0_10 = arith.constant 0 : index
    %9 = vector.load %arg2[%c0_9, %c0_10] : memref<1024x64xbf16, #tpu.memory_space<vmem>>, vector<1024x64xbf16>
    %cst = arith.constant dense<0.000000e+00> : vector<2x64xf32>
    %10 = tpu.matmul %6, %9, %cst {dimension_numbers = #tpu.dot_dimension_numbers<[1], [0], [0], [1], [0, 0, 1, 1], [], []>} : vector<2x1024xbf16>, vector<1024x64xbf16>, vector<2x64xf32> -> vector<2x64xf32>
    %c0_11 = arith.constant 0 : index
    %c0_12 = arith.constant 0 : index
    %11 = vector.load %arg3[%c0_11, %c0_12] : memref<8x64xbf16, #tpu.memory_space<vmem>>, vector<8x64xbf16>
    %cst_13 = arith.constant dense<0.000000e+00> : vector<2x64xf32>
    %12 = tpu.matmul %8, %11, %cst_13 {dimension_numbers = #tpu.dot_dimension_numbers<[1], [0], [0], [1], [0, 0, 1, 1], [], []>} : vector<2x8xbf16>, vector<8x64xbf16>, vector<2x64xf32> -> vector<2x64xf32>
    %13 = arith.addf %10, %12 : vector<2x64xf32>
    %14 = vector.broadcast %0 : vector<1x64xf32> to vector<2x64xf32>
    %15 = arith.addf %13, %14 : vector<2x64xf32>
    %cst_14 = arith.constant dense<0.000000e+00> : vector<64xf32>
    %16 = vector.multi_reduction <add>, %15, %cst_14 [0] : vector<2x64xf32> to vector<64xf32>
    %17 = vector.shape_cast %16 : vector<64xf32> to vector<1x64xf32>
    %18 = arith.mulf %15, %15 : vector<2x64xf32>
    %cst_15 = arith.constant dense<0.000000e+00> : vector<64xf32>
    %19 = vector.multi_reduction <add>, %18, %cst_15 [0] : vector<2x64xf32> to vector<64xf32>
    %20 = vector.shape_cast %19 : vector<64xf32> to vector<1x64xf32>
    %21 = tpu.concatenate %17, %20 in 0 : vector<1x64xf32>, vector<1x64xf32> -> vector<2x64xf32>
    %22 = tpu.iota {dimensions = array<i32: 0>} : vector<64x4xi32>
    %c4_i32 = arith.constant 4 : i32
    %c0_i32 = arith.constant 0 : i32
    %23 = arith.cmpi eq, %c4_i32, %c0_i32 : i32
    %c1_i32 = arith.constant 1 : i32
    %24 = arith.select %23, %c1_i32, %c4_i32 : i32
    %25 = vector.broadcast %24 : i32 to vector<64x4xi32>
    %26 = arith.remsi %22, %25 : vector<64x4xi32>
    %c0_i32_16 = arith.constant 0 : i32
    %27 = vector.broadcast %c0_i32_16 : i32 to vector<64x4xi32>
    %28 = arith.cmpi ne, %26, %27 : vector<64x4xi32>
    %c0_i32_17 = arith.constant 0 : i32
    %29 = vector.broadcast %c0_i32_17 : i32 to vector<64x4xi32>
    %30 = arith.cmpi slt, %26, %29 : vector<64x4xi32>
    %c0_i32_18 = arith.constant 0 : i32
    %31 = arith.cmpi slt, %24, %c0_i32_18 : i32
    %32 = vector.broadcast %31 : i1 to vector<64x4xi1>
    %33 = vector.broadcast %32 : vector<64x4xi1> to vector<64x4xi1>
    %34 = arith.xori %30, %33 : vector<64x4xi1>
    %35 = arith.andi %34, %28 : vector<64x4xi1>
    %36 = vector.broadcast %24 : i32 to vector<64x4xi32>
    %37 = arith.addi %26, %36 : vector<64x4xi32>
    %38 = arith.select %35, %37, %26 : vector<64x4xi1>, vector<64x4xi32>
    %39 = tpu.iota {dimensions = array<i32: 1>} : vector<64x4xi32>
    %40 = arith.cmpi eq, %38, %39 : vector<64x4xi32>
    %41 = arith.extui %40 : vector<64x4xi1> to vector<64x4xi32>
    %42 = arith.sitofp %41 : vector<64x4xi32> to vector<64x4xf32>
    %43 = tpu.iota {dimensions = array<i32: 1>} : vector<4x64xi32>
    %c4_i32_19 = arith.constant 4 : i32
    %c0_i32_20 = arith.constant 0 : i32
    %44 = arith.cmpi eq, %c4_i32_19, %c0_i32_20 : i32
    %c1_i32_21 = arith.constant 1 : i32
    %45 = arith.select %44, %c1_i32_21, %c4_i32_19 : i32
    %46 = vector.broadcast %45 : i32 to vector<4x64xi32>
    %47 = arith.remsi %43, %46 : vector<4x64xi32>
    %c0_i32_22 = arith.constant 0 : i32
    %48 = vector.broadcast %c0_i32_22 : i32 to vector<4x64xi32>
    %49 = arith.cmpi ne, %47, %48 : vector<4x64xi32>
    %c0_i32_23 = arith.constant 0 : i32
    %50 = vector.broadcast %c0_i32_23 : i32 to vector<4x64xi32>
    %51 = arith.cmpi slt, %47, %50 : vector<4x64xi32>
    %c0_i32_24 = arith.constant 0 : i32
    %52 = arith.cmpi slt, %45, %c0_i32_24 : i32
    %53 = vector.broadcast %52 : i1 to vector<4x64xi1>
    %54 = vector.broadcast %53 : vector<4x64xi1> to vector<4x64xi1>
    %55 = arith.xori %51, %54 : vector<4x64xi1>
    %56 = arith.andi %55, %49 : vector<4x64xi1>
    %57 = vector.broadcast %45 : i32 to vector<4x64xi32>
    %58 = arith.addi %47, %57 : vector<4x64xi32>
    %59 = arith.select %56, %58, %47 : vector<4x64xi1>, vector<4x64xi32>
    %60 = tpu.iota {dimensions = array<i32: 0>} : vector<4x64xi32>
    %61 = arith.cmpi eq, %59, %60 : vector<4x64xi32>
    %62 = arith.extui %61 : vector<4x64xi1> to vector<4x64xi32>
    %63 = arith.sitofp %62 : vector<4x64xi32> to vector<4x64xf32>
    %cst_25 = arith.constant dense<0.000000e+00> : vector<2x4xf32>
    %64 = tpu.matmul %21, %42, %cst_25 {dimension_numbers = #tpu.dot_dimension_numbers<[1], [0], [0], [1], [0, 0, 1, 1], [], []>, precision = #tpu.contract_precision<fp32>} : vector<2x64xf32>, vector<64x4xf32>, vector<2x4xf32> -> vector<2x4xf32>
    %65 = vector.extract_strided_slice %64 {offsets = [0, 0], sizes = [1, 4], strides = [1, 1]} : vector<2x4xf32> to vector<1x4xf32>
    %cst_26 = arith.constant 3.200000e+01 : f32
    %66 = vector.broadcast %cst_26 : f32 to vector<1x4xf32>
    %67 = arith.divf %65, %66 : vector<1x4xf32>
    %68 = vector.extract_strided_slice %64 {offsets = [1, 0], sizes = [1, 4], strides = [1, 1]} : vector<2x4xf32> to vector<1x4xf32>
    %cst_27 = arith.constant 3.200000e+01 : f32
    %69 = vector.broadcast %cst_27 : f32 to vector<1x4xf32>
    %70 = arith.divf %68, %69 : vector<1x4xf32>
    %71 = arith.mulf %67, %67 : vector<1x4xf32>
    %72 = arith.subf %70, %71 : vector<1x4xf32>
    %cst_28 = arith.constant 9.99999974E-6 : f32
    %73 = vector.broadcast %cst_28 : f32 to vector<1x4xf32>
    %74 = arith.addf %72, %73 : vector<1x4xf32>
    %75 = math.rsqrt %74 : vector<1x4xf32>
    %76 = tpu.concatenate %67, %75 in 0 : vector<1x4xf32>, vector<1x4xf32> -> vector<2x4xf32>
    %cst_29 = arith.constant dense<0.000000e+00> : vector<2x64xf32>
    %77 = tpu.matmul %76, %63, %cst_29 {dimension_numbers = #tpu.dot_dimension_numbers<[1], [0], [0], [1], [0, 0, 1, 1], [], []>, precision = #tpu.contract_precision<fp32>} : vector<2x4xf32>, vector<4x64xf32>, vector<2x64xf32> -> vector<2x64xf32>
    %78 = vector.extract_strided_slice %77 {offsets = [0, 0], sizes = [1, 64], strides = [1, 1]} : vector<2x64xf32> to vector<1x64xf32>
    %79 = vector.extract_strided_slice %77 {offsets = [1, 0], sizes = [1, 64], strides = [1, 1]} : vector<2x64xf32> to vector<1x64xf32>
    %80 = arith.mulf %79, %1 : vector<1x64xf32>
    %81 = arith.mulf %78, %80 : vector<1x64xf32>
    %82 = arith.subf %2, %81 : vector<1x64xf32>
    %83 = vector.broadcast %80 : vector<1x64xf32> to vector<2x64xf32>
    %84 = arith.mulf %15, %83 : vector<2x64xf32>
    %85 = vector.broadcast %82 : vector<1x64xf32> to vector<2x64xf32>
    %86 = arith.addf %84, %85 : vector<2x64xf32>
    %cst_30 = arith.constant 0.000000e+00 : f32
    %87 = vector.broadcast %cst_30 : f32 to vector<2x64xf32>
    %88 = arith.cmpf ogt, %86, %87 : vector<2x64xf32>
    %cst_31 = arith.constant 2.000000e-01 : f32
    %89 = vector.broadcast %cst_31 : f32 to vector<2x64xf32>
    %90 = arith.mulf %89, %86 : vector<2x64xf32>
    %91 = arith.select %88, %86, %90 : vector<2x64xi1>, vector<2x64xf32>
    %92 = vector.broadcast %3 : vector<1x64xf32> to vector<2x64xf32>
    %93 = arith.mulf %91, %92 : vector<2x64xf32>
    %cst_32 = arith.constant dense<0.000000e+00> : vector<2xf32>
    %94 = vector.multi_reduction <add>, %93, %cst_32 [1] : vector<2x64xf32> to vector<2xf32>
    %95 = vector.shape_cast %94 : vector<2xf32> to vector<2x1xf32>
    %96 = vector.broadcast %4 : vector<1x1xf32> to vector<2x1xf32>
    %97 = arith.addf %95, %96 : vector<2x1xf32>
    %98 = arith.negf %97 : vector<2x1xf32>
    %99 = math.exp %98 : vector<2x1xf32>
    %cst_33 = arith.constant 1.000000e+00 : f32
    %100 = vector.broadcast %cst_33 : f32 to vector<2x1xf32>
    %101 = arith.addf %100, %99 : vector<2x1xf32>
    %102 = arith.divf %100, %101 : vector<2x1xf32>
    %c0_34 = arith.constant 0 : index
    %c0_35 = arith.constant 0 : index
    %103 = vector.load %arg5[%c0_34, %c0_35] : memref<2x1xf32, #tpu.memory_space<vmem>>, vector<2x1xf32>
    tpu.vector_store %arg5[%c0_34, %c0_35], %102 {strides = array<i32>} : memref<2x1xf32, #tpu.memory_space<vmem>>, vector<2x1xf32>,
    return
  }
}

</mosaic_0001>

<llo_original>
// kernel: tpu_custom_call.1
$region0: #{tpu_custom_call.1}
  #allocation0 [shape = 'u32[]', space=smem, size = 0x4, offset = 0x4, fixed_abs, tag = 'smem constant byte address 0x4 - core index']
  #allocation1 [shape = 'u32[144,128]{1,0:T(1,128)}', space=vmem, size = 0x12000, scoped, tag = 'internal scratch']
  %s0 = inlined_call_operand.vmem [shape: f32[2,1024], index: 0, kind: input, shape index: {}]
  %s1 = inlined_call_operand.vmem [shape: f32[2,8], index: 1, kind: input, shape index: {}]
  %s2 = inlined_call_operand.vmem [shape: bf16[1024,64], index: 2, kind: input, shape index: {}]
  %s3 = inlined_call_operand.vmem [shape: bf16[8,64], index: 3, kind: input, shape index: {}]
  %s4 = inlined_call_operand.vmem [shape: f32[8,64], index: 4, kind: input, shape index: {}]
  %s5 = inlined_call_operand.vmem [shape: f32[2,1], index: 5, kind: output, shape index: {}]
  %s6 = sld [smem:[#allocation0]]
  $region30: #{tpu_custom_call.1} parent=0
    _
  %s8 = ssub.s32 1, %s6
  %s9 = scalar_select 0, %s8, %s6
  // Predicated region
  $region2: #{tpu_custom_call.1} parent=0 // pred_check
    _
  $region3: #{tpu_custom_call.1} parent=0 // pred_check_branch
    %11 = sbr.rel (0) target = $region5
  $region4: #{tpu_custom_call.1} parent=0 // pred_region
    _
  $region5: #{tpu_custom_call.1} parent=0 // pred_fallthru
    _
  // Predicated region
  $region6: #{tpu_custom_call.1} parent=0 // pred_check
    _
  $region7: #{tpu_custom_call.1} parent=0 // pred_check_branch
    %13 = sbr.rel (0) target = $region9
  $region8: #{tpu_custom_call.1} parent=0 // pred_region
    _
  $region9: #{tpu_custom_call.1} parent=0 // pred_fallthru
    _
  // Predicated region
  $region10: #{tpu_custom_call.1} parent=0 // pred_check
    _
  $region11: #{tpu_custom_call.1} parent=0 // pred_check_branch
    %15 = sbr.rel (0) target = $region13
  $region12: #{tpu_custom_call.1} parent=0 // pred_region
    _
  $region13: #{tpu_custom_call.1} parent=0 // pred_fallthru
    _
  // Predicated region
  $region14: #{tpu_custom_call.1} parent=0 // pred_check
    _
  $region15: #{tpu_custom_call.1} parent=0 // pred_check_branch
    %17 = sbr.rel (0) target = $region17
  $region16: #{tpu_custom_call.1} parent=0 // pred_region
    _
  $region17: #{tpu_custom_call.1} parent=0 // pred_fallthru
    _
  // Predicated region
  $region18: #{tpu_custom_call.1} parent=0 // pred_check
    _
  $region19: #{tpu_custom_call.1} parent=0 // pred_check_branch
    %19 = sbr.rel (0) target = $region21
  $region20: #{tpu_custom_call.1} parent=0 // pred_region
    _
  $region21: #{tpu_custom_call.1} parent=0 // pred_fallthru
    _
  %v21 = vld [vmem:[%s4] sm:$0x1]
  %v22 = vld [vmem:[%s4 + $0x1] sm:$0x1]
  %v23 = vld [vmem:[%s4 + $0x2] sm:$0x1]
  %v24 = vld [vmem:[%s4 + $0x3] sm:$0x1]
  %v25 = vld [vmem:[%s4 + $0x4] sm:$0x1]
  %v26 = vld [vmem:[%s0] sm:$0xff]
  %v27 = vld [vmem:[%s0 + $0x8] sm:$0xff]
  %v30 = vcombine.high %v26, %v26
  %v32 = vunpack.c.l.s4 1983009808
  %v33 = vunpack.c.0.s8 %v32
  %v34 = vlaneseq
  %v35 = vshrl.u32 %v34, 7
  %v36 = vsub.s32 %v33, %v35
  %v37 = vrot.slane %v26, %v36
  %v39 = vunpack.c.l.s4 1983009808
  %v40 = vunpack.c.0.s8 %v39
  %v41 = vlaneseq
  %v42 = vshrl.u32 %v41, 7
  %v43 = vsub.s32 %v40, %v42
  %v44 = vrot.slane %v30, %v43
  %v45 = vcombine.high %v37, %v37
  %v46 = vcombine.high %v44, %v44
  %v47 = vcombine.high %v27, %v27
  %v49 = vunpack.c.l.s4 1983009808
  %v50 = vunpack.c.0.s8 %v49
  %v51 = vlaneseq
  %v52 = vshrl.u32 %v51, 7
  %v53 = vsub.s32 %v50, %v52
  %v54 = vrot.slane %v27, %v53
  %v56 = vunpack.c.l.s4 1983009808
  %v57 = vunpack.c.0.s8 %v56
  %v58 = vlaneseq
  %v59 = vshrl.u32 %v58, 7
  %v60 = vsub.s32 %v57, %v59
  %v61 = vrot.slane %v47, %v60
  %v62 = vcombine.high %v54, %v54
  %v63 = vcombine.high %v61, %v61
  %v72 = vpack.c.bf16 %v37, %v37
  %v73 = vpack.c.bf16 %v45, %v45
  %v74 = vpack.c.bf16 %v44, %v44
  %v75 = vpack.c.bf16 %v46, %v46
  %v76 = vpack.c.bf16 %v54, %v54
  %v77 = vpack.c.bf16 %v62, %v62
  %v78 = vpack.c.bf16 %v61, %v61
  %v79 = vpack.c.bf16 %v63, %v63
  %v80 = vld [vmem:[%s1] sm:$0x3]
  %v81 = vpack.c.bf16 %v80, %v80
  %v82 = vld [vmem:[%s2] sm:$0xf]
  %v83 = vld [vmem:[%s2 + $0x4] sm:$0xf]
  %v84 = vld [vmem:[%s2 + $0x8] sm:$0xf]
  %v85 = vld [vmem:[%s2 + $0xc] sm:$0xf]
  %v86 = vld [vmem:[%s2 + $0x10] sm:$0xf]
  %v87 = vld [vmem:[%s2 + $0x14] sm:$0xf]
  %v88 = vld [vmem:[%s2 + $0x18] sm:$0xf]
  %v89 = vld [vmem:[%s2 + $0x1c] sm:$0xf]
  %v90 = vld [vmem:[%s2 + $0x20] sm:$0xf]
  %v91 = vld [vmem:[%s2 + $0x24] sm:$0xf]
  %v92 = vld [vmem:[%s2 + $0x28] sm:$0xf]
  %v93 = vld [vmem:[%s2 + $0x2c] sm:$0xf]
  %v94 = vld [vmem:[%s2 + $0x30] sm:$0xf]
  %v95 = vld [vmem:[%s2 + $0x34] sm:$0xf]
  %v96 = vld [vmem:[%s2 + $0x38] sm:$0xf]
  %v97 = vld [vmem:[%s2 + $0x3c] sm:$0xf]
  %v98 = vld [vmem:[%s2 + $0x40] sm:$0xf]
  %v99 = vld [vmem:[%s2 + $0x44] sm:$0xf]
  %v100 = vld [vmem:[%s2 + $0x48] sm:$0xf]
  %v101 = vld [vmem:[%s2 + $0x4c] sm:$0xf]
  %v102 = vld [vmem:[%s2 + $0x50] sm:$0xf]
  %v103 = vld [vmem:[%s2 + $0x54] sm:$0xf]
  %v104 = vld [vmem:[%s2 + $0x58] sm:$0xf]
  %v105 = vld [vmem:[%s2 + $0x5c] sm:$0xf]
  %v106 = vld [vmem:[%s2 + $0x60] sm:$0xf]
  %v107 = vld [vmem:[%s2 + $0x64] sm:$0xf]
  %v108 = vld [vmem:[%s2 + $0x68] sm:$0xf]
  %v109 = vld [vmem:[%s2 + $0x6c] sm:$0xf]
  %v110 = vld [vmem:[%s2 + $0x70] sm:$0xf]
  %v111 = vld [vmem:[%s2 + $0x74] sm:$0xf]
  %v112 = vld [vmem:[%s2 + $0x78] sm:$0xf]
  %v113 = vld [vmem:[%s2 + $0x7c] sm:$0xf]
  %v114 = vld [vmem:[%s2 + $0x80] sm:$0xf]
  %v115 = vld [vmem:[%s2 + $0x84] sm:$0xf]
  %v116 = vld [vmem:[%s2 + $0x88] sm:$0xf]
  %v117 = vld [vmem:[%s2 + $0x8c] sm:$0xf]
  %v118 = vld [vmem:[%s2 + $0x90] sm:$0xf]
  %v119 = vld [vmem:[%s2 + $0x94] sm:$0xf]
  %v120 = vld [vmem:[%s2 + $0x98] sm:$0xf]
  %v121 = vld [vmem:[%s2 + $0x9c] sm:$0xf]
  %v122 = vld [vmem:[%s2 + $0xa0] sm:$0xf]
  %v123 = vld [vmem:[%s2 + $0xa4] sm:$0xf]
  %v124 = vld [vmem:[%s2 + $0xa8] sm:$0xf]
  %v125 = vld [vmem:[%s2 + $0xac] sm:$0xf]
  %v126 = vld [vmem:[%s2 + $0xb0] sm:$0xf]
  %v127 = vld [vmem:[%s2 + $0xb4] sm:$0xf]
  %v128 = vld [vmem:[%s2 + $0xb8] sm:$0xf]
  %v129 = vld [vmem:[%s2 + $0xbc] sm:$0xf]
  %v130 = vld [vmem:[%s2 + $0xc0] sm:$0xf]
  %v131 = vld [vmem:[%s2 + $0xc4] sm:$0xf]
  %v132 = vld [vmem:[%s2 + $0xc8] sm:$0xf]
  %v133 = vld [vmem:[%s2 + $0xcc] sm:$0xf]
  %v134 = vld [vmem:[%s2 + $0xd0] sm:$0xf]
  %v135 = vld [vmem:[%s2 + $0xd4] sm:$0xf]
  %v136 = vld [vmem:[%s2 + $0xd8] sm:$0xf]
  %v137 = vld [vmem:[%s2 + $0xdc] sm:$0xf]
  %v138 = vld [vmem:[%s2 + $0xe0] sm:$0xf]
  %v139 = vld [vmem:[%s2 + $0xe4] sm:$0xf]
  %v140 = vld [vmem:[%s2 + $0xe8] sm:$0xf]
  %v141 = vld [vmem:[%s2 + $0xec] sm:$0xf]
  %v142 = vld [vmem:[%s2 + $0xf0] sm:$0xf]
  %v143 = vld [vmem:[%s2 + $0xf4] sm:$0xf]
  %v144 = vld [vmem:[%s2 + $0xf8] sm:$0xf]
  %v145 = vld [vmem:[%s2 + $0xfc] sm:$0xf]
  %v146 = vld [vmem:[%s2 + $0x100] sm:$0xf]
  %v147 = vld [vmem:[%s2 + $0x104] sm:$0xf]
  %v148 = vld [vmem:[%s2 + $0x108] sm:$0xf]
  %v149 = vld [vmem:[%s2 + $0x10c] sm:$0xf]
  %v150 = vld [vmem:[%s2 + $0x110] sm:$0xf]
  %v151 = vld [vmem:[%s2 + $0x114] sm:$0xf]
  %v152 = vld [vmem:[%s2 + $0x118] sm:$0xf]
  %v153 = vld [vmem:[%s2 + $0x11c] sm:$0xf]
  %v154 = vld [vmem:[%s2 + $0x120] sm:$0xf]
  %v155 = vld [vmem:[%s2 + $0x124] sm:$0xf]
  %v156 = vld [vmem:[%s2 + $0x128] sm:$0xf]
  %v157 = vld [vmem:[%s2 + $0x12c] sm:$0xf]
  %v158 = vld [vmem:[%s2 + $0x130] sm:$0xf]
  %v159 = vld [vmem:[%s2 + $0x134] sm:$0xf]
  %v160 = vld [vmem:[%s2 + $0x138] sm:$0xf]
  %v161 = vld [vmem:[%s2 + $0x13c] sm:$0xf]
  %v162 = vld [vmem:[%s2 + $0x140] sm:$0xf]
  %v163 = vld [vmem:[%s2 + $0x144] sm:$0xf]
  %v164 = vld [vmem:[%s2 + $0x148] sm:$0xf]
  %v165 = vld [vmem:[%s2 + $0x14c] sm:$0xf]
  %v166 = vld [vmem:[%s2 + $0x150] sm:$0xf]
  %v167 = vld [vmem:[%s2 + $0x154] sm:$0xf]
  %v168 = vld [vmem:[%s2 + $0x158] sm:$0xf]
  %v169 = vld [vmem:[%s2 + $0x15c] sm:$0xf]
  %v170 = vld [vmem:[%s2 + $0x160] sm:$0xf]
  %v171 = vld [vmem:[%s2 + $0x164] sm:$0xf]
  %v172 = vld [vmem:[%s2 + $0x168] sm:$0xf]
  %v173 = vld [vmem:[%s2 + $0x16c] sm:$0xf]
  %v174 = vld [vmem:[%s2 + $0x170] sm:$0xf]
  %v175 = vld [vmem:[%s2 + $0x174] sm:$0xf]
  %v176 = vld [vmem:[%s2 + $0x178] sm:$0xf]
  %v177 = vld [vmem:[%s2 + $0x17c] sm:$0xf]
  %v178 = vld [vmem:[%s2 + $0x180] sm:$0xf]
  %v179 = vld [vmem:[%s2 + $0x184] sm:$0xf]
  %v180 = vld [vmem:[%s2 + $0x188] sm:$0xf]
  %v181 = vld [vmem:[%s2 + $0x18c] sm:$0xf]
  %v182 = vld [vmem:[%s2 + $0x190] sm:$0xf]
  %v183 = vld [vmem:[%s2 + $0x194] sm:$0xf]
  %v184 = vld [vmem:[%s2 + $0x198] sm:$0xf]
  %v185 = vld [vmem:[%s2 + $0x19c] sm:$0xf]
  %v186 = vld [vmem:[%s2 + $0x1a0] sm:$0xf]
  %v187 = vld [vmem:[%s2 + $0x1a4] sm:$0xf]
  %v188 = vld [vmem:[%s2 + $0x1a8] sm:$0xf]
  %v189 = vld [vmem:[%s2 + $0x1ac] sm:$0xf]
  %v190 = vld [vmem:[%s2 + $0x1b0] sm:$0xf]
  %v191 = vld [vmem:[%s2 + $0x1b4] sm:$0xf]
  %v192 = vld [vmem:[%s2 + $0x1b8] sm:$0xf]
  %v193 = vld [vmem:[%s2 + $0x1bc] sm:$0xf]
  %v194 = vld [vmem:[%s2 + $0x1c0] sm:$0xf]
  %v195 = vld [vmem:[%s2 + $0x1c4] sm:$0xf]
  %v196 = vld [vmem:[%s2 + $0x1c8] sm:$0xf]
  %v197 = vld [vmem:[%s2 + $0x1cc] sm:$0xf]
  %v198 = vld [vmem:[%s2 + $0x1d0] sm:$0xf]
  %v199 = vld [vmem:[%s2 + $0x1d4] sm:$0xf]
  %v200 = vld [vmem:[%s2 + $0x1d8] sm:$0xf]
  %v201 = vld [vmem:[%s2 + $0x1dc] sm:$0xf]
  %v202 = vld [vmem:[%s2 + $0x1e0] sm:$0xf]
  %v203 = vld [vmem:[%s2 + $0x1e4] sm:$0xf]
  %v204 = vld [vmem:[%s2 + $0x1e8] sm:$0xf]
  %v205 = vld [vmem:[%s2 + $0x1ec] sm:$0xf]
  %v206 = vld [vmem:[%s2 + $0x1f0] sm:$0xf]
  %v207 = vld [vmem:[%s2 + $0x1f4] sm:$0xf]
  %v208 = vld [vmem:[%s2 + $0x1f8] sm:$0xf]
  %v209 = vld [vmem:[%s2 + $0x1fc] sm:$0xf]
  %v210 = vld [vmem:[%s3] sm:$0xf]
  %vm211 = vcmask 64512
  %v213 = vsel %vm211, %v81, 0
  %vm215 = vcmask 1043456
  %v217 = vsel %vm215, %v210, 0
  %219 = vmatprep.subr.bf16.mxu0 0
  %220 = vmatpush1.bf16.msra.mxu0 %v217
  %221 = vmatprep.subr.bf16.mxu0 0
  %222 = vmatpush1.bf16.msra.mxu0 0
  %223 = vmatprep.subr.bf16.mxu0 0
  %224 = vmatpush1.bf16.msra.mxu0 0
  %225 = vmatprep.subr.bf16.mxu0 0
  %226 = vmatpush1.bf16.msra.mxu0 0
  %227 = vmatprep.subr.bf16.mxu0 0
  %228 = vmatpush1.bf16.msra.mxu0 0
  %229 = vmatprep.subr.bf16.mxu0 0
  %230 = vmatpush1.bf16.msra.mxu0 0
  %231 = vmatprep.subr.bf16.mxu0 0
  %232 = vmatpush1.bf16.msra.mxu0 0
  %233 = vmatprep.subr.bf16.mxu0 0
  %234 = vmatpush1.bf16.msra.mxu0 0
  %235 = vmatprep.subr.bf16.mxu0 0
  %236 = vmatpush1.bf16.msra.mxu0 0
  %237 = vmatprep.subr.bf16.mxu0 0
  %238 = vmatpush1.bf16.msra.mxu0 0
  %239 = vmatprep.subr.bf16.mxu0 0
  %240 = vmatpush1.bf16.msra.mxu0 0
  %241 = vmatprep.subr.bf16.mxu0 0
  %242 = vmatpush1.bf16.msra.mxu0 0
  %243 = vmatprep.subr.bf16.mxu0 0
  %244 = vmatpush1.bf16.msra.mxu0 0
  %245 = vmatprep.subr.bf16.mxu0 0
  %246 = vmatpush1.bf16.msra.mxu0 0
  %247 = vmatprep.subr.bf16.mxu0 0
  %248 = vmatpush1.bf16.msra.mxu0 0
  %249 = vmatprep.subr.bf16.mxu0 0
  %250 = vmatpush1.bf16.msra.mxu0 0
  %251 = vmatprep.mubr.bf16.mxu0 0
  %252 = vmatmul.mubr.bf16.gmra.mrb[0].mxu0 %v213
  %v253 = vpop.f32.mrb[0].mxu0
  %v254 = vadd.f32 0.0, %v253
  %v255 = vpop.f32.mrb[0].mxu0
  %v256 = vpop.f32.mrb[0].mxu0
  %v257 = vpop.f32.mrb[0].mxu0
  %258 = vdwg.mxu0
  %v387 = vunpack.c.l.b16 %v82
  %v388 = vunpack.c.l.b16 %v83
  %v389 = vunpack.c.l.b16 %v84
  %v390 = vunpack.c.l.b16 %v85
  %v391 = vunpack.c.l.b16 %v86
  %v392 = vunpack.c.l.b16 %v87
  %v393 = vunpack.c.l.b16 %v88
  %v394 = vunpack.c.l.b16 %v89
  %v395 = vunpack.c.l.b16 %v90
  %v396 = vunpack.c.l.b16 %v91
  %v397 = vunpack.c.l.b16 %v92
  %v398 = vunpack.c.l.b16 %v93
  %v399 = vunpack.c.l.b16 %v94
  %v400 = vunpack.c.l.b16 %v95
  %v401 = vunpack.c.l.b16 %v96
  %v402 = vunpack.c.l.b16 %v97
  %v403 = vunpack.c.l.b16 %v98
  %v404 = vunpack.c.l.b16 %v99
  %v405 = vunpack.c.l.b16 %v100
  %v406 = vunpack.c.l.b16 %v101
  %v407 = vunpack.c.l.b16 %v102
  %v408 = vunpack.c.l.b16 %v103
  %v409 = vunpack.c.l.b16 %v104
  %v410 = vunpack.c.l.b16 %v105
  %v411 = vunpack.c.l.b16 %v106
  %v412 = vunpack.c.l.b16 %v107
  %v413 = vunpack.c.l.b16 %v108
  %v414 = vunpack.c.l.b16 %v109
  %v415 = vunpack.c.l.b16 %v110
  %v416 = vunpack.c.l.b16 %v111
  %v417 = vunpack.c.l.b16 %v112
  %v418 = vunpack.c.l.b16 %v113
  %v419 = vunpack.c.l.b16 %v114
  %v420 = vunpack.c.l.b16 %v115
  %v421 = vunpack.c.l.b16 %v116
  %v422 = vunpack.c.l.b16 %v117
  %v423 = vunpack.c.l.b16 %v118
  %v424 = vunpack.c.l.b16 %v119
  %v425 = vunpack.c.l.b16 %v120
  %v426 = vunpack.c.l.b16 %v121
  %v427 = vunpack.c.l.b16 %v122
  %v428 = vunpack.c.l.b16 %v123
  %v429 = vunpack.c.l.b16 %v124
  %v430 = vunpack.c.l.b16 %v125
  %v431 = vunpack.c.l.b16 %v126
  %v432 = vunpack.c.l.b16 %v127
  %v433 = vunpack.c.l.b16 %v128
  %v434 = vunpack.c.l.b16 %v129
  %v435 = vunpack.c.l.b16 %v130
  %v436 = vunpack.c.l.b16 %v131
  %v437 = vunpack.c.l.b16 %v132
  %v438 = vunpack.c.l.b16 %v133
  %v439 = vunpack.c.l.b16 %v134
  %v440 = vunpack.c.l.b16 %v135
  %v441 = vunpack.c.l.b16 %v136
  %v442 = vunpack.c.l.b16 %v137
  %v443 = vunpack.c.l.b16 %v138
  %v444 = vunpack.c.l.b16 %v139
  %v445 = vunpack.c.l.b16 %v140
  %v446 = vunpack.c.l.b16 %v141
  %v447 = vunpack.c.l.b16 %v142
  %v448 = vunpack.c.l.b16 %v143
  %v449 = vunpack.c.l.b16 %v144
  %v450 = vunpack.c.l.b16 %v145
  %v451 = vunpack.c.l.b16 %v146
  %v452 = vunpack.c.l.b16 %v147
  %v453 = vunpack.c.l.b16 %v148
  %v454 = vunpack.c.l.b16 %v149
  %v455 = vunpack.c.l.b16 %v150
  %v456 = vunpack.c.l.b16 %v151
  %v457 = vunpack.c.l.b16 %v152
  %v458 = vunpack.c.l.b16 %v153
  %v459 = vunpack.c.l.b16 %v154
  %v460 = vunpack.c.l.b16 %v155
  %v461 = vunpack.c.l.b16 %v156
  %v462 = vunpack.c.l.b16 %v157
  %v463 = vunpack.c.l.b16 %v158
  %v464 = vunpack.c.l.b16 %v159
  %v465 = vunpack.c.l.b16 %v160
  %v466 = vunpack.c.l.b16 %v161
  %v467 = vunpack.c.l.b16 %v162
  %v468 = vunpack.c.l.b16 %v163
  %v469 = vunpack.c.l.b16 %v164
  %v470 = vunpack.c.l.b16 %v165
  %v471 = vunpack.c.l.b16 %v166
  %v472 = vunpack.c.l.b16 %v167
  %v473 = vunpack.c.l.b16 %v168
  %v474 = vunpack.c.l.b16 %v169
  %v475 = vunpack.c.l.b16 %v170
  %v476 = vunpack.c.l.b16 %v171
  %v477 = vunpack.c.l.b16 %v172
  %v478 = vunpack.c.l.b16 %v173
  %v479 = vunpack.c.l.b16 %v174
  %v480 = vunpack.c.l.b16 %v175
  %v481 = vunpack.c.l.b16 %v176
  %v482 = vunpack.c.l.b16 %v177
  %v483 = vunpack.c.l.b16 %v178
  %v484 = vunpack.c.l.b16 %v179
  %v485 = vunpack.c.l.b16 %v180
  %v486 = vunpack.c.l.b16 %v181
  %v487 = vunpack.c.l.b16 %v182
  %v488 = vunpack.c.l.b16 %v183
  %v489 = vunpack.c.l.b16 %v184
  %v490 = vunpack.c.l.b16 %v185
  %v491 = vunpack.c.l.b16 %v186
  %v492 = vunpack.c.l.b16 %v187
  %v493 = vunpack.c.l.b16 %v188
  %v494 = vunpack.c.l.b16 %v189
  %v495 = vunpack.c.l.b16 %v190
  %v496 = vunpack.c.l.b16 %v191
  %v497 = vunpack.c.l.b16 %v192
  %v498 = vunpack.c.l.b16 %v193
  %v499 = vunpack.c.l.b16 %v194
  %v500 = vunpack.c.l.b16 %v195
  %v501 = vunpack.c.l.b16 %v196
  %v502 = vunpack.c.l.b16 %v197
  %v503 = vunpack.c.l.b16 %v198
  %v504 = vunpack.c.l.b16 %v199
  %v505 = vunpack.c.l.b16 %v200
  %v506 = vunpack.c.l.b16 %v201
  %v507 = vunpack.c.l.b16 %v202
  %v508 = vunpack.c.l.b16 %v203
  %v509 = vunpack.c.l.b16 %v204
  %v510 = vunpack.c.l.b16 %v205
  %v511 = vunpack.c.l.b16 %v206
  %v512 = vunpack.c.l.b16 %v207
  %v513 = vunpack.c.l.b16 %v208
  %v514 = vunpack.c.l.b16 %v209
  %v515 = vpack.c.b16 %v388, %v387
  %v516 = vpack.c.b16 %v390, %v389
  %v517 = vpack.c.b16 %v392, %v391
  %v518 = vpack.c.b16 %v394, %v393
  %v519 = vpack.c.b16 %v396, %v395
  %v520 = vpack.c.b16 %v398, %v397
  %v521 = vpack.c.b16 %v400, %v399
  %v522 = vpack.c.b16 %v402, %v401
  %v523 = vpack.c.b16 %v404, %v403
  %v524 = vpack.c.b16 %v406, %v405
  %v525 = vpack.c.b16 %v408, %v407
  %v526 = vpack.c.b16 %v410, %v409
  %v527 = vpack.c.b16 %v412, %v411
  %v528 = vpack.c.b16 %v414, %v413
  %v529 = vpack.c.b16 %v416, %v415
  %v530 = vpack.c.b16 %v418, %v417
  %v531 = vpack.c.b16 %v420, %v419
  %v532 = vpack.c.b16 %v422, %v421
  %v533 = vpack.c.b16 %v424, %v423
  %v534 = vpack.c.b16 %v426, %v425
  %v535 = vpack.c.b16 %v428, %v427
  %v536 = vpack.c.b16 %v430, %v429
  %v537 = vpack.c.b16 %v432, %v431
  %v538 = vpack.c.b16 %v434, %v433
  %v539 = vpack.c.b16 %v436, %v435
  %v540 = vpack.c.b16 %v438, %v437
  %v541 = vpack.c.b16 %v440, %v439
  %v542 = vpack.c.b16 %v442, %v441
  %v543 = vpack.c.b16 %v444, %v443
  %v544 = vpack.c.b16 %v446, %v445
  %v545 = vpack.c.b16 %v448, %v447
  %v546 = vpack.c.b16 %v450, %v449
  %v547 = vpack.c.b16 %v452, %v451
  %v548 = vpack.c.b16 %v454, %v453
  %v549 = vpack.c.b16 %v456, %v455
  %v550 = vpack.c.b16 %v458, %v457
  %v551 = vpack.c.b16 %v460, %v459
  %v552 = vpack.c.b16 %v462, %v461
  %v553 = vpack.c.b16 %v464, %v463
  %v554 = vpack.c.b16 %v466, %v465
  %v555 = vpack.c.b16 %v468, %v467
  %v556 = vpack.c.b16 %v470, %v469
  %v557 = vpack.c.b16 %v472, %v471
  %v558 = vpack.c.b16 %v474, %v473
  %v559 = vpack.c.b16 %v476, %v475
  %v560 = vpack.c.b16 %v478, %v477
  %v561 = vpack.c.b16 %v480, %v479
  %v562 = vpack.c.b16 %v482, %v481
  %v563 = vpack.c.b16 %v484, %v483
  %v564 = vpack.c.b16 %v486, %v485
  %v565 = vpack.c.b16 %v488, %v487
  %v566 = vpack.c.b16 %v490, %v489
  %v567 = vpack.c.b16 %v492, %v491
  %v568 = vpack.c.b16 %v494, %v493
  %v569 = vpack.c.b16 %v496, %v495
  %v570 = vpack.c.b16 %v498, %v497
  %v571 = vpack.c.b16 %v500, %v499
  %v572 = vpack.c.b16 %v502, %v501
  %v573 = vpack.c.b16 %v504, %v503
  %v574 = vpack.c.b16 %v506, %v505
  %v575 = vpack.c.b16 %v508, %v507
  %v576 = vpack.c.b16 %v510, %v509
  %v577 = vpack.c.b16 %v512, %v511
  %v578 = vpack.c.b16 %v514, %v513
  %643 = vmatprep.subr.bf16.mxu0 0
  %644 = vmatpush1.bf16.msra.mxu0 %v515
  %645 = vmatprep.subr.bf16.mxu0 0
  %646 = vmatpush1.bf16.msra.mxu0 %v516
  %647 = vmatprep.subr.bf16.mxu0 0
  %648 = vmatpush1.bf16.msra.mxu0 %v517
  %649 = vmatprep.subr.bf16.mxu0 0
  %650 = vmatpush1.bf16.msra.mxu0 %v518
  %651 = vmatprep.subr.bf16.mxu0 0
  %652 = vmatpush1.bf16.msra.mxu0 %v519
  %653 = vmatprep.subr.bf16.mxu0 0
  %654 = vmatpush1.bf16.msra.mxu0 %v520
  %655 = vmatprep.subr.bf16.mxu0 0
  %656 = vmatpush1.bf16.msra.mxu0 %v521
  %657 = vmatprep.subr.bf16.mxu0 0
  %658 = vmatpush1.bf16.msra.mxu0 %v522
  %659 = vmatprep.subr.bf16.mxu0 0
  %660 = vmatpush1.bf16.msra.mxu0 %v523
  %661 = vmatprep.subr.bf16.mxu0 0
  %662 = vmatpush1.bf16.msra.mxu0 %v524
  %663 = vmatprep.subr.bf16.mxu0 0
  %664 = vmatpush1.bf16.msra.mxu0 %v525
  %665 = vmatprep.subr.bf16.mxu0 0
  %666 = vmatpush1.bf16.msra.mxu0 %v526
  %667 = vmatprep.subr.bf16.mxu0 0
  %668 = vmatpush1.bf16.msra.mxu0 %v527
  %669 = vmatprep.subr.bf16.mxu0 0
  %670 = vmatpush1.bf16.msra.mxu0 %v528
  %671 = vmatprep.subr.bf16.mxu0 0
  %672 = vmatpush1.bf16.msra.mxu0 %v529
  %673 = vmatprep.subr.bf16.mxu0 0
  %674 = vmatpush1.bf16.msra.mxu0 %v530
  %675 = vmatprep.mubr.bf16.mxu0 %v73
  %676 = vmatmul.mubr.bf16.gmra.mrb[0].mxu0 %v72
  %v677 = vpop.f32.mrb[0].mxu0
  %v678 = vadd.f32 %v254, %v677
  %v679 = vpop.f32.mrb[0].mxu0
  %v680 = vpop.f32.mrb[0].mxu0
  %v681 = vpop.f32.mrb[0].mxu0
  %682 = vdwg.mxu0
  %683 = vmatprep.subr.bf16.mxu0 0
  %684 = vmatpush1.bf16.msra.mxu0 %v531
  %685 = vmatprep.subr.bf16.mxu0 0
  %686 = vmatpush1.bf16.msra.mxu0 %v532
  %687 = vmatprep.subr.bf16.mxu0 0
  %688 = vmatpush1.bf16.msra.mxu0 %v533
  %689 = vmatprep.subr.bf16.mxu0 0
  %690 = vmatpush1.bf16.msra.mxu0 %v534
  %691 = vmatprep.subr.bf16.mxu0 0
  %692 = vmatpush1.bf16.msra.mxu0 %v535
  %693 = vmatprep.subr.bf16.mxu0 0
  %694 = vmatpush1.bf16.msra.mxu0 %v536
  %695 = vmatprep.subr.bf16.mxu0 0
  %696 = vmatpush1.bf16.msra.mxu0 %v537
  %697 = vmatprep.subr.bf16.mxu0 0
  %698 = vmatpush1.bf16.msra.mxu0 %v538
  %699 = vmatprep.subr.bf16.mxu0 0
  %700 = vmatpush1.bf16.msra.mxu0 %v539
  %701 = vmatprep.subr.bf16.mxu0 0
  %702 = vmatpush1.bf16.msra.mxu0 %v540
  %703 = vmatprep.subr.bf16.mxu0 0
  %704 = vmatpush1.bf16.msra.mxu0 %v541
  %705 = vmatprep.subr.bf16.mxu0 0
  %706 = vmatpush1.bf16.msra.mxu0 %v542
  %707 = vmatprep.subr.bf16.mxu0 0
  %708 = vmatpush1.bf16.msra.mxu0 %v543
  %709 = vmatprep.subr.bf16.mxu0 0
  %710 = vmatpush1.bf16.msra.mxu0 %v544
  %711 = vmatprep.subr.bf16.mxu0 0
  %712 = vmatpush1.bf16.msra.mxu0 %v545
  %713 = vmatprep.subr.bf16.mxu0 0
  %714 = vmatpush1.bf16.msra.mxu0 %v546
  %715 = vmatprep.mubr.bf16.mxu0 %v75
  %716 = vmatmul.mubr.bf16.gmra.mrb[0].mxu0 %v74
  %v717 = vpop.f32.mrb[0].mxu0
  %v718 = vadd.f32 %v678, %v717
  %v719 = vpop.f32.mrb[0].mxu0
  %v720 = vpop.f32.mrb[0].mxu0
  %v721 = vpop.f32.mrb[0].mxu0
  %722 = vdwg.mxu0
  %723 = vmatprep.subr.bf16.mxu0 0
  %724 = vmatpush1.bf16.msra.mxu0 %v547
  %725 = vmatprep.subr.bf16.mxu0 0
  %726 = vmatpush1.bf16.msra.mxu0 %v548
  %727 = vmatprep.subr.bf16.mxu0 0
  %728 = vmatpush1.bf16.msra.mxu0 %v549
  %729 = vmatprep.subr.bf16.mxu0 0
  %730 = vmatpush1.bf16.msra.mxu0 %v550
  %731 = vmatprep.subr.bf16.mxu0 0
  %732 = vmatpush1.bf16.msra.mxu0 %v551
  %733 = vmatprep.subr.bf16.mxu0 0
  %734 = vmatpush1.bf16.msra.mxu0 %v552
  %735 = vmatprep.subr.bf16.mxu0 0
  %736 = vmatpush1.bf16.msra.mxu0 %v553
  %737 = vmatprep.subr.bf16.mxu0 0
  %738 = vmatpush1.bf16.msra.mxu0 %v554
  %739 = vmatprep.subr.bf16.mxu0 0
  %740 = vmatpush1.bf16.msra.mxu0 %v555
  %741 = vmatprep.subr.bf16.mxu0 0
  %742 = vmatpush1.bf16.msra.mxu0 %v556
  %743 = vmatprep.subr.bf16.mxu0 0
  %744 = vmatpush1.bf16.msra.mxu0 %v557
  %745 = vmatprep.subr.bf16.mxu0 0
  %746 = vmatpush1.bf16.msra.mxu0 %v558
  %747 = vmatprep.subr.bf16.mxu0 0
  %748 = vmatpush1.bf16.msra.mxu0 %v559
  %749 = vmatprep.subr.bf16.mxu0 0
  %750 = vmatpush1.bf16.msra.mxu0 %v560
  %751 = vmatprep.subr.bf16.mxu0 0
  %752 = vmatpush1.bf16.msra.mxu0 %v561
  %753 = vmatprep.subr.bf16.mxu0 0
  %754 = vmatpush1.bf16.msra.mxu0 %v562
  %755 = vmatprep.mubr.bf16.mxu0 %v77
  %756 = vmatmul.mubr.bf16.gmra.mrb[0].mxu0 %v76
  %v757 = vpop.f32.mrb[0].mxu0
  %v758 = vadd.f32 %v718, %v757
  %v759 = vpop.f32.mrb[0].mxu0
  %v760 = vpop.f32.mrb[0].mxu0
  %v761 = vpop.f32.mrb[0].mxu0
  %762 = vdwg.mxu0
  %763 = vmatprep.subr.bf16.mxu0 0
  %764 = vmatpush1.bf16.msra.mxu0 %v563
  %765 = vmatprep.subr.bf16.mxu0 0
  %766 = vmatpush1.bf16.msra.mxu0 %v564
  %767 = vmatprep.subr.bf16.mxu0 0
  %768 = vmatpush1.bf16.msra.mxu0 %v565
  %769 = vmatprep.subr.bf16.mxu0 0
  %770 = vmatpush1.bf16.msra.mxu0 %v566
  %771 = vmatprep.subr.bf16.mxu0 0
  %772 = vmatpush1.bf16.msra.mxu0 %v567
  %773 = vmatprep.subr.bf16.mxu0 0
  %774 = vmatpush1.bf16.msra.mxu0 %v568
  %775 = vmatprep.subr.bf16.mxu0 0
  %776 = vmatpush1.bf16.msra.mxu0 %v569
  %777 = vmatprep.subr.bf16.mxu0 0
  %778 = vmatpush1.bf16.msra.mxu0 %v570
  %779 = vmatprep.subr.bf16.mxu0 0
  %780 = vmatpush1.bf16.msra.mxu0 %v571
  %781 = vmatprep.subr.bf16.mxu0 0
  %782 = vmatpush1.bf16.msra.mxu0 %v572
  %783 = vmatprep.subr.bf16.mxu0 0
  %784 = vmatpush1.bf16.msra.mxu0 %v573
  %785 = vmatprep.subr.bf16.mxu0 0
  %786 = vmatpush1.bf16.msra.mxu0 %v574
  %787 = vmatprep.subr.bf16.mxu0 0
  %788 = vmatpush1.bf16.msra.mxu0 %v575
  %789 = vmatprep.subr.bf16.mxu0 0
  %790 = vmatpush1.bf16.msra.mxu0 %v576
  %791 = vmatprep.subr.bf16.mxu0 0
  %792 = vmatpush1.bf16.msra.mxu0 %v577
  %793 = vmatprep.subr.bf16.mxu0 0
  %794 = vmatpush1.bf16.msra.mxu0 %v578
  %795 = vmatprep.mubr.bf16.mxu0 %v79
  %796 = vmatmul.mubr.bf16.gmra.mrb[0].mxu0 %v78
  %v797 = vpop.f32.mrb[0].mxu0
  %v798 = vadd.f32 %v758, %v797
  %v799 = vpop.f32.mrb[0].mxu0
  %v800 = vpop.f32.mrb[0].mxu0
  %v801 = vpop.f32.mrb[0].mxu0
  %802 = vdwg.mxu0
  %v803 = vlaneseq
  %v804 = vshrl.u32 %v803, 7
  %v805 = vsub.s32 0, %v804
  %v806 = vrot.slane %v21, %v805
  %v807 = vadd.f32 %v798, %v806
  %vm808 = vcmask 517120
  %v809 = vsel %vm808, %v807, 0.0
  %v810 = vrot.slane %v809, 4
  %v811 = vadd.f32 %v809, %v810
  %v812 = vrot.slane %v811, 2
  %v813 = vadd.f32 %v811, %v812
  %v814 = vrot.slane %v813, 1
  %v815 = vadd.f32 %v813, %v814
  %v816 = vmul.f32 %v807, %v807
  %v817 = vsel %vm808, %v816, 0.0
  %v818 = vrot.slane %v817, 4
  %v819 = vadd.f32 %v817, %v818
  %v820 = vrot.slane %v819, 2
  %v821 = vadd.f32 %v819, %v820
  %v822 = vrot.slane %v821, 1
  %v823 = vadd.f32 %v821, %v822
  %vm824 = vcmask 1040384
  %v825 = vsel %vm824, %v815, %v823
  %v826 = vlaneseq
  %v827 = vshrl.u32 %v826, 7
  %v828 = vadd.s32 %v827, 8
  %v829 = vadd.s32 %v827, 16
  %v830 = vadd.s32 %v827, 24
  %v831 = vadd.s32 %v827, 32
  %v832 = vadd.s32 %v827, 40
  %v833 = vadd.s32 %v827, 48
  %v834 = vadd.s32 %v827, 56
  %vm835 = vcmp.lt.s32.totalorder %v827, 0
  %v836 = vsub.s32 0, %v827
  %v837 = vsel %vm835, %v836, %v827
  %v838 = vshrl.u32 %v837, 2
  %v839 = vand.u32 %v837, 3
  %v840 = vsub.s32 0, %v839
  %v841 = vsel %vm835, %v840, %v839
  %vm842 = vcmp.lt.s32.totalorder %v828, 0
  %v843 = vsub.s32 0, %v828
  %v844 = vsel %vm842, %v843, %v828
  %v845 = vshrl.u32 %v844, 2
  %v846 = vand.u32 %v844, 3
  %v847 = vsub.s32 0, %v846
  %v848 = vsel %vm842, %v847, %v846
  %vm849 = vcmp.lt.s32.totalorder %v829, 0
  %v850 = vsub.s32 0, %v829
  %v851 = vsel %vm849, %v850, %v829
  %v852 = vshrl.u32 %v851, 2
  %v853 = vand.u32 %v851, 3
  %v854 = vsub.s32 0, %v853
  %v855 = vsel %vm849, %v854, %v853
  %vm856 = vcmp.lt.s32.totalorder %v830, 0
  %v857 = vsub.s32 0, %v830
  %v858 = vsel %vm856, %v857, %v830
  %v859 = vshrl.u32 %v858, 2
  %v860 = vand.u32 %v858, 3
  %v861 = vsub.s32 0, %v860
  %v862 = vsel %vm856, %v861, %v860
  %vm863 = vcmp.lt.s32.totalorder %v831, 0
  %v864 = vsub.s32 0, %v831
  %v865 = vsel %vm863, %v864, %v831
  %v866 = vshrl.u32 %v865, 2
  %v867 = vand.u32 %v865, 3
  %v868 = vsub.s32 0, %v867
  %v869 = vsel %vm863, %v868, %v867
  %vm870 = vcmp.lt.s32.totalorder %v832, 0
  %v871 = vsub.s32 0, %v832
  %v872 = vsel %vm870, %v871, %v832
  %v873 = vshrl.u32 %v872, 2
  %v874 = vand.u32 %v872, 3
  %v875 = vsub.s32 0, %v874
  %v876 = vsel %vm870, %v875, %v874
  %vm877 = vcmp.lt.s32.totalorder %v833, 0
  %v878 = vsub.s32 0, %v833
  %v879 = vsel %vm877, %v878, %v833
  %v880 = vshrl.u32 %v879, 2
  %v881 = vand.u32 %v879, 3
  %v882 = vsub.s32 0, %v881
  %v883 = vsel %vm877, %v882, %v881
  %vm884 = vcmp.lt.s32.totalorder %v834, 0
  %v885 = vsub.s32 0, %v834
  %v886 = vsel %vm884, %v885, %v834
  %v887 = vshrl.u32 %v886, 2
  %v888 = vand.u32 %v886, 3
  %v889 = vsub.s32 0, %v888
  %v890 = vsel %vm884, %v889, %v888
  %vm891 = vcmp.ne.s32.totalorder %v841, 0
  %vm892 = vcmp.ne.s32.totalorder %v848, 0
  %vm893 = vcmp.ne.s32.totalorder %v855, 0
  %vm894 = vcmp.ne.s32.totalorder %v862, 0
  %vm895 = vcmp.ne.s32.totalorder %v869, 0
  %vm896 = vcmp.ne.s32.totalorder %v876, 0
  %vm897 = vcmp.ne.s32.totalorder %v883, 0
  %vm898 = vcmp.ne.s32.totalorder %v890, 0
  %vm899 = vcmp.lt.s32.totalorder %v841, 0
  %vm900 = vcmp.lt.s32.totalorder %v848, 0
  %vm901 = vcmp.lt.s32.totalorder %v855, 0
  %vm902 = vcmp.lt.s32.totalorder %v862, 0
  %vm903 = vcmp.lt.s32.totalorder %v869, 0
  %vm904 = vcmp.lt.s32.totalorder %v876, 0
  %vm905 = vcmp.lt.s32.totalorder %v883, 0
  %vm906 = vcmp.lt.s32.totalorder %v890, 0
  %vm907 = vmand %vm899, %vm891
  %vm908 = vmand %vm900, %vm892
  %vm909 = vmand %vm901, %vm893
  %vm910 = vmand %vm902, %vm894
  %vm911 = vmand %vm903, %vm895
  %vm912 = vmand %vm904, %vm896
  %vm913 = vmand %vm905, %vm897
  %vm914 = vmand %vm906, %vm898
  %v915 = vadd.s32 %v841, 4
  %v916 = vadd.s32 %v848, 4
  %v917 = vadd.s32 %v855, 4
  %v918 = vadd.s32 %v862, 4
  %v919 = vadd.s32 %v869, 4
  %v920 = vadd.s32 %v876, 4
  %v921 = vadd.s32 %v883, 4
  %v922 = vadd.s32 %v890, 4
  %v923 = vsel %vm907, %v915, %v841
  %v924 = vsel %vm908, %v916, %v848
  %v925 = vsel %vm909, %v917, %v855
  %v926 = vsel %vm910, %v918, %v862
  %v927 = vsel %vm911, %v919, %v869
  %v928 = vsel %vm912, %v920, %v876
  %v929 = vsel %vm913, %v921, %v883
  %v930 = vsel %vm914, %v922, %v890
  %v931 = vlaneseq
  %v932 = vand.u32 %v931, 127
  %vm933 = vcmp.eq.s32.totalorder %v923, %v932
  %vm934 = vcmp.eq.s32.totalorder %v924, %v932
  %vm935 = vcmp.eq.s32.totalorder %v925, %v932
  %vm936 = vcmp.eq.s32.totalorder %v926, %v932
  %vm937 = vcmp.eq.s32.totalorder %v927, %v932
  %vm938 = vcmp.eq.s32.totalorder %v928, %v932
  %vm939 = vcmp.eq.s32.totalorder %v929, %v932
  %vm940 = vcmp.eq.s32.totalorder %v930, %v932
  %v941 = vsel %vm933, 1, 0
  %v942 = vsel %vm934, 1, 0
  %v943 = vsel %vm935, 1, 0
  %v944 = vsel %vm936, 1, 0
  %v945 = vsel %vm937, 1, 0
  %v946 = vsel %vm938, 1, 0
  %v947 = vsel %vm939, 1, 0
  %v948 = vsel %vm940, 1, 0
  %v949 = vcvt.s32.f32 %v941
  %v950 = vcvt.s32.f32 %v942
  %v951 = vcvt.s32.f32 %v943
  %v952 = vcvt.s32.f32 %v944
  %v953 = vcvt.s32.f32 %v945
  %v954 = vcvt.s32.f32 %v946
  %v955 = vcvt.s32.f32 %v947
  %v956 = vcvt.s32.f32 %v948
  %vm957 = vcmp.lt.s32.totalorder %v932, 0
  %v958 = vsub.s32 0, %v932
  %v959 = vsel %vm957, %v958, %v932
  %v960 = vshrl.u32 %v959, 2
  %v961 = vand.u32 %v959, 3
  %v962 = vsub.s32 0, %v961
  %v963 = vsel %vm957, %v962, %v961
  %vm964 = vcmp.ne.s32.totalorder %v963, 0
  %vm965 = vcmp.lt.s32.totalorder %v963, 0
  %vm966 = vmand %vm965, %vm964
  %v967 = vadd.s32 %v963, 4
  %v968 = vsel %vm966, %v967, %v963
  %vm969 = vcmp.eq.s32.totalorder %v968, %v827
  %v970 = vsel %vm969, 1, 0
  %v971 = vcvt.s32.f32 %v970
  %vm972 = vcmask 523264
  %v974 = vsel %vm972, %v825, 0
  %976 = vmatprep.subr.mxu0 0.0
  %v977 = vand.u32 %v949, 4294901760
  %978 = vmatpush1.msra.mxu0 %v977
  %979 = vmatprep.subr.mxu0 0.0
  %v980 = vand.u32 %v950, 4294901760
  %981 = vmatpush1.msra.mxu0 %v980
  %982 = vmatprep.subr.mxu0 0.0
  %v983 = vand.u32 %v951, 4294901760
  %984 = vmatpush1.msra.mxu0 %v983
  %985 = vmatprep.subr.mxu0 0.0
  %v986 = vand.u32 %v952, 4294901760
  %987 = vmatpush1.msra.mxu0 %v986
  %988 = vmatprep.subr.mxu0 0.0
  %v989 = vand.u32 %v953, 4294901760
  %990 = vmatpush1.msra.mxu0 %v989
  %991 = vmatprep.subr.mxu0 0.0
  %v992 = vand.u32 %v954, 4294901760
  %993 = vmatpush1.msra.mxu0 %v992
  %994 = vmatprep.subr.mxu0 0.0
  %v995 = vand.u32 %v955, 4294901760
  %996 = vmatpush1.msra.mxu0 %v995
  %997 = vmatprep.subr.mxu0 0.0
  %v998 = vand.u32 %v956, 4294901760
  %999 = vmatpush1.msra.mxu0 %v998
  %1000 = vmatprep.subr.mxu0 0.0
  %1001 = vmatpush1.msra.mxu0 0.0
  %1002 = vmatprep.subr.mxu0 0.0
  %1003 = vmatpush1.msra.mxu0 0.0
  %1004 = vmatprep.subr.mxu0 0.0
  %1005 = vmatpush1.msra.mxu0 0.0
  %1006 = vmatprep.subr.mxu0 0.0
  %1007 = vmatpush1.msra.mxu0 0.0
  %1008 = vmatprep.subr.mxu0 0.0
  %1009 = vmatpush1.msra.mxu0 0.0
  %1010 = vmatprep.subr.mxu0 0.0
  %1011 = vmatpush1.msra.mxu0 0.0
  %1012 = vmatprep.subr.mxu0 0.0
  %1013 = vmatpush1.msra.mxu0 0.0
  %1014 = vmatprep.subr.mxu0 0.0
  %1015 = vmatpush1.msra.mxu0 0.0
  %1016 = vmatprep.subr.mxu0 0.0
  %1017 = vmatpush1.msra.mxu0 0.0
  %1018 = vmatprep.subr.mxu0 0.0
  %1019 = vmatpush1.msra.mxu0 0.0
  %1020 = vmatprep.subr.mxu0 0.0
  %1021 = vmatpush1.msra.mxu0 0.0
  %1022 = vmatprep.subr.mxu0 0.0
  %1023 = vmatpush1.msra.mxu0 0.0
  %1024 = vmatprep.subr.mxu0 0.0
  %1025 = vmatpush1.msra.mxu0 0.0
  %1026 = vmatprep.subr.mxu0 0.0
  %1027 = vmatpush1.msra.mxu0 0.0
  %1028 = vmatprep.subr.mxu0 0.0
  %1029 = vmatpush1.msra.mxu0 0.0
  %1030 = vmatprep.subr.mxu0 0.0
  %1031 = vmatpush1.msra.mxu0 0.0
  %1032 = vmatprep.subr.mxu0 0.0
  %1033 = vmatpush1.msra.mxu0 0.0
  %1034 = vmatprep.subr.mxu0 0.0
  %1035 = vmatpush1.msra.mxu0 0.0
  %1036 = vmatprep.subr.mxu0 0.0
  %1037 = vmatpush1.msra.mxu0 0.0
  %1038 = vmatprep.subr.mxu0 0.0
  %1039 = vmatpush1.msra.mxu0 0.0
  %1040 = vmatprep.subr.mxu0 0.0
  %1041 = vmatpush1.msra.mxu0 0.0
  %1042 = vmatprep.subr.mxu0 0.0
  %1043 = vmatpush1.msra.mxu0 0.0
  %1044 = vmatprep.subr.mxu0 0.0
  %1045 = vmatpush1.msra.mxu0 0.0
  %1046 = vmatprep.subr.mxu0 0.0
  %1047 = vmatpush1.msra.mxu0 0.0
  %1048 = vmatprep.mubr.f32.mxu0 0.0
  %v1049 = vand.u32 %v974, 4294901760
  %v1050 = vsub.f32 %v974, %v1049
  %v1051 = vand.u32 %v1050, 4294901760
  %v1052 = vsub.f32 %v1050, %v1051
  %v1053 = vand.u32 %v1052, 4294901760
  %1054 = vmatmul.mubr.f32.gmra.mrb[0].mxu0 %v1053
  %v1055 = vpop.f32.mrb[0].mxu0
  %v1056 = vadd.f32 0.0, %v1055
  %v1057 = vpop.f32.mrb[0].mxu0
  %1058 = vdwg.mxu0
  %1059 = vmatprep.subr.mxu0 0.0
  %v1060 = vand.u32 %v949, 4294901760
  %v1061 = vsub.f32 %v949, %v1060
  %v1062 = vand.u32 %v1061, 4294901760
  %v1063 = vsub.f32 %v1061, %v1062
  %v1064 = vand.u32 %v1063, 4294901760
  %1065 = vmatpush1.msra.mxu0 %v1064
  %1066 = vmatprep.subr.mxu0 0.0
  %v1067 = vand.u32 %v950, 4294901760
  %v1068 = vsub.f32 %v950, %v1067
  %v1069 = vand.u32 %v1068, 4294901760
  %v1070 = vsub.f32 %v1068, %v1069
  %v1071 = vand.u32 %v1070, 4294901760
  %1072 = vmatpush1.msra.mxu0 %v1071
  %1073 = vmatprep.subr.mxu0 0.0
  %v1074 = vand.u32 %v951, 4294901760
  %v1075 = vsub.f32 %v951, %v1074
  %v1076 = vand.u32 %v1075, 4294901760
  %v1077 = vsub.f32 %v1075, %v1076
  %v1078 = vand.u32 %v1077, 4294901760
  %1079 = vmatpush1.msra.mxu0 %v1078
  %1080 = vmatprep.subr.mxu0 0.0
  %v1081 = vand.u32 %v952, 4294901760
  %v1082 = vsub.f32 %v952, %v1081
  %v1083 = vand.u32 %v1082, 4294901760
  %v1084 = vsub.f32 %v1082, %v1083
  %v1085 = vand.u32 %v1084, 4294901760
  %1086 = vmatpush1.msra.mxu0 %v1085
  %1087 = vmatprep.subr.mxu0 0.0
  %v1088 = vand.u32 %v953, 4294901760
  %v1089 = vsub.f32 %v953, %v1088
  %v1090 = vand.u32 %v1089, 4294901760
  %v1091 = vsub.f32 %v1089, %v1090
  %v1092 = vand.u32 %v1091, 4294901760
  %1093 = vmatpush1.msra.mxu0 %v1092
  %1094 = vmatprep.subr.mxu0 0.0
  %v1095 = vand.u32 %v954, 4294901760
  %v1096 = vsub.f32 %v954, %v1095
  %v1097 = vand.u32 %v1096, 4294901760
  %v1098 = vsub.f32 %v1096, %v1097
  %v1099 = vand.u32 %v1098, 4294901760
  %1100 = vmatpush1.msra.mxu0 %v1099
  %1101 = vmatprep.subr.mxu0 0.0
  %v1102 = vand.u32 %v955, 4294901760
  %v1103 = vsub.f32 %v955, %v1102
  %v1104 = vand.u32 %v1103, 4294901760
  %v1105 = vsub.f32 %v1103, %v1104
  %v1106 = vand.u32 %v1105, 4294901760
  %1107 = vmatpush1.msra.mxu0 %v1106
  %1108 = vmatprep.subr.mxu0 0.0
  %v1109 = vand.u32 %v956, 4294901760
  %v1110 = vsub.f32 %v956, %v1109
  %v1111 = vand.u32 %v1110, 4294901760
  %v1112 = vsub.f32 %v1110, %v1111
  %v1113 = vand.u32 %v1112, 4294901760
  %1114 = vmatpush1.msra.mxu0 %v1113
  %1115 = vmatprep.subr.mxu0 0.0
  %1116 = vmatpush1.msra.mxu0 0.0
  %1117 = vmatprep.subr.mxu0 0.0
  %1118 = vmatpush1.msra.mxu0 0.0
  %1119 = vmatprep.subr.mxu0 0.0
  %1120 = vmatpush1.msra.mxu0 0.0
  %1121 = vmatprep.subr.mxu0 0.0
  %1122 = vmatpush1.msra.mxu0 0.0
  %1123 = vmatprep.subr.mxu0 0.0
  %1124 = vmatpush1.msra.mxu0 0.0
  %1125 = vmatprep.subr.mxu0 0.0
  %1126 = vmatpush1.msra.mxu0 0.0
  %1127 = vmatprep.subr.mxu0 0.0
  %1128 = vmatpush1.msra.mxu0 0.0
  %1129 = vmatprep.subr.mxu0 0.0
  %1130 = vmatpush1.msra.mxu0 0.0
  %1131 = vmatprep.subr.mxu0 0.0
  %1132 = vmatpush1.msra.mxu0 0.0
  %1133 = vmatprep.subr.mxu0 0.0
  %1134 = vmatpush1.msra.mxu0 0.0
  %1135 = vmatprep.subr.mxu0 0.0
  %1136 = vmatpush1.msra.mxu0 0.0
  %1137 = vmatprep.subr.mxu0 0.0
  %1138 = vmatpush1.msra.mxu0 0.0
  %1139 = vmatprep.subr.mxu0 0.0
  %1140 = vmatpush1.msra.mxu0 0.0
  %1141 = vmatprep.subr.mxu0 0.0
  %1142 = vmatpush1.msra.mxu0 0.0
  %1143 = vmatprep.subr.mxu0 0.0
  %1144 = vmatpush1.msra.mxu0 0.0
  %1145 = vmatprep.subr.mxu0 0.0
  %1146 = vmatpush1.msra.mxu0 0.0
  %1147 = vmatprep.subr.mxu0 0.0
  %1148 = vmatpush1.msra.mxu0 0.0
  %1149 = vmatprep.subr.mxu0 0.0
  %1150 = vmatpush1.msra.mxu0 0.0
  %1151 = vmatprep.subr.mxu0 0.0
  %1152 = vmatpush1.msra.mxu0 0.0
  %1153 = vmatprep.subr.mxu0 0.0
  %1154 = vmatpush1.msra.mxu0 0.0
  %1155 = vmatprep.subr.mxu0 0.0
  %1156 = vmatpush1.msra.mxu0 0.0
  %1157 = vmatprep.subr.mxu0 0.0
  %1158 = vmatpush1.msra.mxu0 0.0
  %1159 = vmatprep.subr.mxu0 0.0
  %1160 = vmatpush1.msra.mxu0 0.0
  %1161 = vmatprep.subr.mxu0 0.0
  %1162 = vmatpush1.msra.mxu0 0.0
  %1163 = vmatprep.mubr.f32.mxu0 0.0
  %v1164 = vand.u32 %v974, 4294901760
  %1165 = vmatmul.mubr.f32.gmra.mrb[0].mxu0 %v1164
  %v1166 = vpop.f32.mrb[0].mxu0
  %v1167 = vadd.f32 %v1056, %v1166
  %v1168 = vpop.f32.mrb[0].mxu0
  %1169 = vdwg.mxu0
  %1170 = vmatprep.subr.mxu0 0.0
  %v1171 = vand.u32 %v949, 4294901760
  %v1172 = vsub.f32 %v949, %v1171
  %1173 = vmatpush1.msra.mxu0 %v1172
  %1174 = vmatprep.subr.mxu0 0.0
  %v1175 = vand.u32 %v950, 4294901760
  %v1176 = vsub.f32 %v950, %v1175
  %1177 = vmatpush1.msra.mxu0 %v1176
  %1178 = vmatprep.subr.mxu0 0.0
  %v1179 = vand.u32 %v951, 4294901760
  %v1180 = vsub.f32 %v951, %v1179
  %1181 = vmatpush1.msra.mxu0 %v1180
  %1182 = vmatprep.subr.mxu0 0.0
  %v1183 = vand.u32 %v952, 4294901760
  %v1184 = vsub.f32 %v952, %v1183
  %1185 = vmatpush1.msra.mxu0 %v1184
  %1186 = vmatprep.subr.mxu0 0.0
  %v1187 = vand.u32 %v953, 4294901760
  %v1188 = vsub.f32 %v953, %v1187
  %1189 = vmatpush1.msra.mxu0 %v1188
  %1190 = vmatprep.subr.mxu0 0.0
  %v1191 = vand.u32 %v954, 4294901760
  %v1192 = vsub.f32 %v954, %v1191
  %1193 = vmatpush1.msra.mxu0 %v1192
  %1194 = vmatprep.subr.mxu0 0.0
  %v1195 = vand.u32 %v955, 4294901760
  %v1196 = vsub.f32 %v955, %v1195
  %1197 = vmatpush1.msra.mxu0 %v1196
  %1198 = vmatprep.subr.mxu0 0.0
  %v1199 = vand.u32 %v956, 4294901760
  %v1200 = vsub.f32 %v956, %v1199
  %1201 = vmatpush1.msra.mxu0 %v1200
  %1202 = vmatprep.subr.mxu0 0.0
  %1203 = vmatpush1.msra.mxu0 0.0
  %1204 = vmatprep.subr.mxu0 0.0
  %1205 = vmatpush1.msra.mxu0 0.0
  %1206 = vmatprep.subr.mxu0 0.0
  %1207 = vmatpush1.msra.mxu0 0.0
  %1208 = vmatprep.subr.mxu0 0.0
  %1209 = vmatpush1.msra.mxu0 0.0
  %1210 = vmatprep.subr.mxu0 0.0
  %1211 = vmatpush1.msra.mxu0 0.0
  %1212 = vmatprep.subr.mxu0 0.0
  %1213 = vmatpush1.msra.mxu0 0.0
  %1214 = vmatprep.subr.mxu0 0.0
  %1215 = vmatpush1.msra.mxu0 0.0
  %1216 = vmatprep.subr.mxu0 0.0
  %1217 = vmatpush1.msra.mxu0 0.0
  %1218 = vmatprep.subr.mxu0 0.0
  %1219 = vmatpush1.msra.mxu0 0.0
  %1220 = vmatprep.subr.mxu0 0.0
  %1221 = vmatpush1.msra.mxu0 0.0
  %1222 = vmatprep.subr.mxu0 0.0
  %1223 = vmatpush1.msra.mxu0 0.0
  %1224 = vmatprep.subr.mxu0 0.0
  %1225 = vmatpush1.msra.mxu0 0.0
  %1226 = vmatprep.subr.mxu0 0.0
  %1227 = vmatpush1.msra.mxu0 0.0
  %1228 = vmatprep.subr.mxu0 0.0
  %1229 = vmatpush1.msra.mxu0 0.0
  %1230 = vmatprep.subr.mxu0 0.0
  %1231 = vmatpush1.msra.mxu0 0.0
  %1232 = vmatprep.subr.mxu0 0.0
  %1233 = vmatpush1.msra.mxu0 0.0
  %1234 = vmatprep.subr.mxu0 0.0
  %1235 = vmatpush1.msra.mxu0 0.0
  %1236 = vmatprep.subr.mxu0 0.0
  %1237 = vmatpush1.msra.mxu0 0.0
  %1238 = vmatprep.subr.mxu0 0.0
  %1239 = vmatpush1.msra.mxu0 0.0
  %1240 = vmatprep.subr.mxu0 0.0
  %1241 = vmatpush1.msra.mxu0 0.0
  %1242 = vmatprep.subr.mxu0 0.0
  %1243 = vmatpush1.msra.mxu0 0.0
  %1244 = vmatprep.subr.mxu0 0.0
  %1245 = vmatpush1.msra.mxu0 0.0
  %1246 = vmatprep.subr.mxu0 0.0
  %1247 = vmatpush1.msra.mxu0 0.0
  %1248 = vmatprep.subr.mxu0 0.0
  %1249 = vmatpush1.msra.mxu0 0.0
  %1250 = vmatprep.mubr.f32.mxu0 0.0
  %v1251 = vand.u32 %v974, 4294901760
  %v1252 = vsub.f32 %v974, %v1251
  %1253 = vmatmul.mubr.f32.gmra.mrb[0].mxu0 %v1252
  %v1254 = vpop.f32.mrb[0].mxu0
  %v1255 = vadd.f32 %v1167, %v1254
  %v1256 = vpop.f32.mrb[0].mxu0
  %1257 = vdwg.mxu0
  %1258 = vmatprep.subr.mxu0 0.0
  %v1259 = vand.u32 %v949, 4294901760
  %1260 = vmatpush1.msra.mxu0 %v1259
  %1261 = vmatprep.subr.mxu0 0.0
  %v1262 = vand.u32 %v950, 4294901760
  %1263 = vmatpush1.msra.mxu0 %v1262
  %1264 = vmatprep.subr.mxu0 0.0
  %v1265 = vand.u32 %v951, 4294901760
  %1266 = vmatpush1.msra.mxu0 %v1265
  %1267 = vmatprep.subr.mxu0 0.0
  %v1268 = vand.u32 %v952, 4294901760
  %1269 = vmatpush1.msra.mxu0 %v1268
  %1270 = vmatprep.subr.mxu0 0.0
  %v1271 = vand.u32 %v953, 4294901760
  %1272 = vmatpush1.msra.mxu0 %v1271
  %1273 = vmatprep.subr.mxu0 0.0
  %v1274 = vand.u32 %v954, 4294901760
  %1275 = vmatpush1.msra.mxu0 %v1274
  %1276 = vmatprep.subr.mxu0 0.0
  %v1277 = vand.u32 %v955, 4294901760
  %1278 = vmatpush1.msra.mxu0 %v1277
  %1279 = vmatprep.subr.mxu0 0.0
  %v1280 = vand.u32 %v956, 4294901760
  %1281 = vmatpush1.msra.mxu0 %v1280
  %1282 = vmatprep.subr.mxu0 0.0
  %1283 = vmatpush1.msra.mxu0 0.0
  %1284 = vmatprep.subr.mxu0 0.0
  %1285 = vmatpush1.msra.mxu0 0.0
  %1286 = vmatprep.subr.mxu0 0.0
  %1287 = vmatpush1.msra.mxu0 0.0
  %1288 = vmatprep.subr.mxu0 0.0
  %1289 = vmatpush1.msra.mxu0 0.0
  %1290 = vmatprep.subr.mxu0 0.0
  %1291 = vmatpush1.msra.mxu0 0.0
  %1292 = vmatprep.subr.mxu0 0.0
  %1293 = vmatpush1.msra.mxu0 0.0
  %1294 = vmatprep.subr.mxu0 0.0
  %1295 = vmatpush1.msra.mxu0 0.0
  %1296 = vmatprep.subr.mxu0 0.0
  %1297 = vmatpush1.msra.mxu0 0.0
  %1298 = vmatprep.subr.mxu0 0.0
  %1299 = vmatpush1.msra.mxu0 0.0
  %1300 = vmatprep.subr.mxu0 0.0
  %1301 = vmatpush1.msra.mxu0 0.0
  %1302 = vmatprep.subr.mxu0 0.0
  %1303 = vmatpush1.msra.mxu0 0.0
  %1304 = vmatprep.subr.mxu0 0.0
  %1305 = vmatpush1.msra.mxu0 0.0
  %1306 = vmatprep.subr.mxu0 0.0
  %1307 = vmatpush1.msra.mxu0 0.0
  %1308 = vmatprep.subr.mxu0 0.0
  %1309 = vmatpush1.msra.mxu0 0.0
  %1310 = vmatprep.subr.mxu0 0.0
  %1311 = vmatpush1.msra.mxu0 0.0
  %1312 = vmatprep.subr.mxu0 0.0
  %1313 = vmatpush1.msra.mxu0 0.0
  %1314 = vmatprep.subr.mxu0 0.0
  %1315 = vmatpush1.msra.mxu0 0.0
  %1316 = vmatprep.subr.mxu0 0.0
  %1317 = vmatpush1.msra.mxu0 0.0
  %1318 = vmatprep.subr.mxu0 0.0
  %1319 = vmatpush1.msra.mxu0 0.0
  %1320 = vmatprep.subr.mxu0 0.0
  %1321 = vmatpush1.msra.mxu0 0.0
  %1322 = vmatprep.subr.mxu0 0.0
  %1323 = vmatpush1.msra.mxu0 0.0
  %1324 = vmatprep.subr.mxu0 0.0
  %1325 = vmatpush1.msra.mxu0 0.0
  %1326 = vmatprep.subr.mxu0 0.0
  %1327 = vmatpush1.msra.mxu0 0.0
  %1328 = vmatprep.subr.mxu0 0.0
  %1329 = vmatpush1.msra.mxu0 0.0
  %1330 = vmatprep.mubr.f32.mxu0 0.0
  %v1331 = vand.u32 %v974, 4294901760
  %v1332 = vsub.f32 %v974, %v1331
  %v1333 = vand.u32 %v1332, 4294901760
  %1334 = vmatmul.mubr.f32.gmra.mrb[0].mxu0 %v1333
  %v1335 = vpop.f32.mrb[0].mxu0
  %v1336 = vadd.f32 %v1255, %v1335
  %v1337 = vpop.f32.mrb[0].mxu0
  %1338 = vdwg.mxu0
  %1339 = vmatprep.subr.mxu0 0.0
  %v1340 = vand.u32 %v949, 4294901760
  %v1341 = vsub.f32 %v949, %v1340
  %v1342 = vand.u32 %v1341, 4294901760
  %1343 = vmatpush1.msra.mxu0 %v1342
  %1344 = vmatprep.subr.mxu0 0.0
  %v1345 = vand.u32 %v950, 4294901760
  %v1346 = vsub.f32 %v950, %v1345
  %v1347 = vand.u32 %v1346, 4294901760
  %1348 = vmatpush1.msra.mxu0 %v1347
  %1349 = vmatprep.subr.mxu0 0.0
  %v1350 = vand.u32 %v951, 4294901760
  %v1351 = vsub.f32 %v951, %v1350
  %v1352 = vand.u32 %v1351, 4294901760
  %1353 = vmatpush1.msra.mxu0 %v1352
  %1354 = vmatprep.subr.mxu0 0.0
  %v1355 = vand.u32 %v952, 4294901760
  %v1356 = vsub.f32 %v952, %v1355
  %v1357 = vand.u32 %v1356, 4294901760
  %1358 = vmatpush1.msra.mxu0 %v1357
  %1359 = vmatprep.subr.mxu0 0.0
  %v1360 = vand.u32 %v953, 4294901760
  %v1361 = vsub.f32 %v953, %v1360
  %v1362 = vand.u32 %v1361, 4294901760
  %1363 = vmatpush1.msra.mxu0 %v1362
  %1364 = vmatprep.subr.mxu0 0.0
  %v1365 = vand.u32 %v954, 4294901760
  %v1366 = vsub.f32 %v954, %v1365
  %v1367 = vand.u32 %v1366, 4294901760
  %1368 = vmatpush1.msra.mxu0 %v1367
  %1369 = vmatprep.subr.mxu0 0.0
  %v1370 = vand.u32 %v955, 4294901760
  %v1371 = vsub.f32 %v955, %v1370
  %v1372 = vand.u32 %v1371, 4294901760
  %1373 = vmatpush1.msra.mxu0 %v1372
  %1374 = vmatprep.subr.mxu0 0.0
  %v1375 = vand.u32 %v956, 4294901760
  %v1376 = vsub.f32 %v956, %v1375
  %v1377 = vand.u32 %v1376, 4294901760
  %1378 = vmatpush1.msra.mxu0 %v1377
  %1379 = vmatprep.subr.mxu0 0.0
  %1380 = vmatpush1.msra.mxu0 0.0
  %1381 = vmatprep.subr.mxu0 0.0
  %1382 = vmatpush1.msra.mxu0 0.0
  %1383 = vmatprep.subr.mxu0 0.0
  %1384 = vmatpush1.msra.mxu0 0.0
  %1385 = vmatprep.subr.mxu0 0.0
  %1386 = vmatpush1.msra.mxu0 0.0
  %1387 = vmatprep.subr.mxu0 0.0
  %1388 = vmatpush1.msra.mxu0 0.0
  %1389 = vmatprep.subr.mxu0 0.0
  %1390 = vmatpush1.msra.mxu0 0.0
  %1391 = vmatprep.subr.mxu0 0.0
  %1392 = vmatpush1.msra.mxu0 0.0
  %1393 = vmatprep.subr.mxu0 0.0
  %1394 = vmatpush1.msra.mxu0 0.0
  %1395 = vmatprep.subr.mxu0 0.0
  %1396 = vmatpush1.msra.mxu0 0.0
  %1397 = vmatprep.subr.mxu0 0.0
  %1398 = vmatpush1.msra.mxu0 0.0
  %1399 = vmatprep.subr.mxu0 0.0
  %1400 = vmatpush1.msra.mxu0 0.0
  %1401 = vmatprep.subr.mxu0 0.0
  %1402 = vmatpush1.msra.mxu0 0.0
  %1403 = vmatprep.subr.mxu0 0.0
  %1404 = vmatpush1.msra.mxu0 0.0
  %1405 = vmatprep.subr.mxu0 0.0
  %1406 = vmatpush1.msra.mxu0 0.0
  %1407 = vmatprep.subr.mxu0 0.0
  %1408 = vmatpush1.msra.mxu0 0.0
  %1409 = vmatprep.subr.mxu0 0.0
  %1410 = vmatpush1.msra.mxu0 0.0
  %1411 = vmatprep.subr.mxu0 0.0
  %1412 = vmatpush1.msra.mxu0 0.0
  %1413 = vmatprep.subr.mxu0 0.0
  %1414 = vmatpush1.msra.mxu0 0.0
  %1415 = vmatprep.subr.mxu0 0.0
  %1416 = vmatpush1.msra.mxu0 0.0
  %1417 = vmatprep.subr.mxu0 0.0
  %1418 = vmatpush1.msra.mxu0 0.0
  %1419 = vmatprep.subr.mxu0 0.0
  %1420 = vmatpush1.msra.mxu0 0.0
  %1421 = vmatprep.subr.mxu0 0.0
  %1422 = vmatpush1.msra.mxu0 0.0
  %1423 = vmatprep.subr.mxu0 0.0
  %1424 = vmatpush1.msra.mxu0 0.0
  %1425 = vmatprep.subr.mxu0 0.0
  %1426 = vmatpush1.msra.mxu0 0.0
  %1427 = vmatprep.mubr.f32.mxu0 0.0
  %v1428 = vand.u32 %v974, 4294901760
  %1429 = vmatmul.mubr.f32.gmra.mrb[0].mxu0 %v1428
  %v1430 = vpop.f32.mrb[0].mxu0
  %v1431 = vadd.f32 %v1336, %v1430
  %v1432 = vpop.f32.mrb[0].mxu0
  %1433 = vdwg.mxu0
  %1434 = vmatprep.subr.mxu0 0.0
  %v1435 = vand.u32 %v949, 4294901760
  %1436 = vmatpush1.msra.mxu0 %v1435
  %1437 = vmatprep.subr.mxu0 0.0
  %v1438 = vand.u32 %v950, 4294901760
  %1439 = vmatpush1.msra.mxu0 %v1438
  %1440 = vmatprep.subr.mxu0 0.0
  %v1441 = vand.u32 %v951, 4294901760
  %1442 = vmatpush1.msra.mxu0 %v1441
  %1443 = vmatprep.subr.mxu0 0.0
  %v1444 = vand.u32 %v952, 4294901760
  %1445 = vmatpush1.msra.mxu0 %v1444
  %1446 = vmatprep.subr.mxu0 0.0
  %v1447 = vand.u32 %v953, 4294901760
  %1448 = vmatpush1.msra.mxu0 %v1447
  %1449 = vmatprep.subr.mxu0 0.0
  %v1450 = vand.u32 %v954, 4294901760
  %1451 = vmatpush1.msra.mxu0 %v1450
  %1452 = vmatprep.subr.mxu0 0.0
  %v1453 = vand.u32 %v955, 4294901760
  %1454 = vmatpush1.msra.mxu0 %v1453
  %1455 = vmatprep.subr.mxu0 0.0
  %v1456 = vand.u32 %v956, 4294901760
  %1457 = vmatpush1.msra.mxu0 %v1456
  %1458 = vmatprep.subr.mxu0 0.0
  %1459 = vmatpush1.msra.mxu0 0.0
  %1460 = vmatprep.subr.mxu0 0.0
  %1461 = vmatpush1.msra.mxu0 0.0
  %1462 = vmatprep.subr.mxu0 0.0
  %1463 = vmatpush1.msra.mxu0 0.0
  %1464 = vmatprep.subr.mxu0 0.0
  %1465 = vmatpush1.msra.mxu0 0.0
  %1466 = vmatprep.subr.mxu0 0.0
  %1467 = vmatpush1.msra.mxu0 0.0
  %1468 = vmatprep.subr.mxu0 0.0
  %1469 = vmatpush1.msra.mxu0 0.0
  %1470 = vmatprep.subr.mxu0 0.0
  %1471 = vmatpush1.msra.mxu0 0.0
  %1472 = vmatprep.subr.mxu0 0.0
  %1473 = vmatpush1.msra.mxu0 0.0
  %1474 = vmatprep.subr.mxu0 0.0
  %1475 = vmatpush1.msra.mxu0 0.0
  %1476 = vmatprep.subr.mxu0 0.0
  %1477 = vmatpush1.msra.mxu0 0.0
  %1478 = vmatprep.subr.mxu0 0.0
  %1479 = vmatpush1.msra.mxu0 0.0
  %1480 = vmatprep.subr.mxu0 0.0
  %1481 = vmatpush1.msra.mxu0 0.0
  %1482 = vmatprep.subr.mxu0 0.0
  %1483 = vmatpush1.msra.mxu0 0.0
  %1484 = vmatprep.subr.mxu0 0.0
  %1485 = vmatpush1.msra.mxu0 0.0
  %1486 = vmatprep.subr.mxu0 0.0
  %1487 = vmatpush1.msra.mxu0 0.0
  %1488 = vmatprep.subr.mxu0 0.0
  %1489 = vmatpush1.msra.mxu0 0.0
  %1490 = vmatprep.subr.mxu0 0.0
  %1491 = vmatpush1.msra.mxu0 0.0
  %1492 = vmatprep.subr.mxu0 0.0
  %1493 = vmatpush1.msra.mxu0 0.0
  %1494 = vmatprep.subr.mxu0 0.0
  %1495 = vmatpush1.msra.mxu0 0.0
  %1496 = vmatprep.subr.mxu0 0.0
  %1497 = vmatpush1.msra.mxu0 0.0
  %1498 = vmatprep.subr.mxu0 0.0
  %1499 = vmatpush1.msra.mxu0 0.0
  %1500 = vmatprep.subr.mxu0 0.0
  %1501 = vmatpush1.msra.mxu0 0.0
  %1502 = vmatprep.subr.mxu0 0.0
  %1503 = vmatpush1.msra.mxu0 0.0
  %1504 = vmatprep.subr.mxu0 0.0
  %1505 = vmatpush1.msra.mxu0 0.0
  %1506 = vmatprep.mubr.f32.mxu0 0.0
  %v1507 = vand.u32 %v974, 4294901760
  %1508 = vmatmul.mubr.f32.gmra.mrb[0].mxu0 %v1507
  %v1509 = vpop.f32.mrb[0].mxu0
  %v1510 = vadd.f32 %v1431, %v1509
  %v1511 = vpop.f32.mrb[0].mxu0
  %1512 = vdwg.mxu0
  %v1513 = vrcp.pop 32.0
  %v1514 = vmul.f32 %v1510, %v1513
  %v1515 = vmul.f32 %v1514, %v1514
  %v1517 = vrot.slane %v1515, 7
  %v1519 = vsub.f32 %v1514, %v1517
  %v1520 = vadd.f32 %v1519, 1e-05
  %v1521 = vrsqrt.pop %v1520
  %v1522 = vsel %vm824, %v1514, %v1521
  %vm1523 = vcmask 31744
  %v1525 = vsel %vm1523, %v1522, 0
  %v1528 = vsel %vm215, %v971, 0
  %1530 = vmatprep.subr.mxu0 0.0
  %v1531 = vand.u32 %v1528, 4294901760
  %1532 = vmatpush1.msra.mxu0 %v1531
  %1533 = vmatprep.subr.mxu0 0.0
  %1534 = vmatpush1.msra.mxu0 0.0
  %1535 = vmatprep.subr.mxu0 0.0
  %1536 = vmatpush1.msra.mxu0 0.0
  %1537 = vmatprep.subr.mxu0 0.0
  %1538 = vmatpush1.msra.mxu0 0.0
  %1539 = vmatprep.subr.mxu0 0.0
  %1540 = vmatpush1.msra.mxu0 0.0
  %1541 = vmatprep.subr.mxu0 0.0
  %1542 = vmatpush1.msra.mxu0 0.0
  %1543 = vmatprep.subr.mxu0 0.0
  %1544 = vmatpush1.msra.mxu0 0.0
  %1545 = vmatprep.subr.mxu0 0.0
  %1546 = vmatpush1.msra.mxu0 0.0
  %1547 = vmatprep.subr.mxu0 0.0
  %1548 = vmatpush1.msra.mxu0 0.0
  %1549 = vmatprep.subr.mxu0 0.0
  %1550 = vmatpush1.msra.mxu0 0.0
  %1551 = vmatprep.subr.mxu0 0.0
  %1552 = vmatpush1.msra.mxu0 0.0
  %1553 = vmatprep.subr.mxu0 0.0
  %1554 = vmatpush1.msra.mxu0 0.0
  %1555 = vmatprep.subr.mxu0 0.0
  %1556 = vmatpush1.msra.mxu0 0.0
  %1557 = vmatprep.subr.mxu0 0.0
  %1558 = vmatpush1.msra.mxu0 0.0
  %1559 = vmatprep.subr.mxu0 0.0
  %1560 = vmatpush1.msra.mxu0 0.0
  %1561 = vmatprep.subr.mxu0 0.0
  %1562 = vmatpush1.msra.mxu0 0.0
  %1563 = vmatprep.subr.mxu0 0.0
  %1564 = vmatpush1.msra.mxu0 0.0
  %1565 = vmatprep.subr.mxu0 0.0
  %1566 = vmatpush1.msra.mxu0 0.0
  %1567 = vmatprep.subr.mxu0 0.0
  %1568 = vmatpush1.msra.mxu0 0.0
  %1569 = vmatprep.subr.mxu0 0.0
  %1570 = vmatpush1.msra.mxu0 0.0
  %1571 = vmatprep.subr.mxu0 0.0
  %1572 = vmatpush1.msra.mxu0 0.0
  %1573 = vmatprep.subr.mxu0 0.0
  %1574 = vmatpush1.msra.mxu0 0.0
  %1575 = vmatprep.subr.mxu0 0.0
  %1576 = vmatpush1.msra.mxu0 0.0
  %1577 = vmatprep.subr.mxu0 0.0
  %1578 = vmatpush1.msra.mxu0 0.0
  %1579 = vmatprep.subr.mxu0 0.0
  %1580 = vmatpush1.msra.mxu0 0.0
  %1581 = vmatprep.subr.mxu0 0.0
  %1582 = vmatpush1.msra.mxu0 0.0
  %1583 = vmatprep.subr.mxu0 0.0
  %1584 = vmatpush1.msra.mxu0 0.0
  %1585 = vmatprep.subr.mxu0 0.0
  %1586 = vmatpush1.msra.mxu0 0.0
  %1587 = vmatprep.subr.mxu0 0.0
  %1588 = vmatpush1.msra.mxu0 0.0
  %1589 = vmatprep.subr.mxu0 0.0
  %1590 = vmatpush1.msra.mxu0 0.0
  %1591 = vmatprep.subr.mxu0 0.0
  %1592 = vmatpush1.msra.mxu0 0.0
  %1593 = vmatprep.subr.mxu0 0.0
  %1594 = vmatpush1.msra.mxu0 0.0
  %1595 = vmatprep.mubr.f32.mxu0 0.0
  %v1596 = vand.u32 %v1525, 4294901760
  %v1597 = vsub.f32 %v1525, %v1596
  %v1598 = vand.u32 %v1597, 4294901760
  %v1599 = vsub.f32 %v1597, %v1598
  %v1600 = vand.u32 %v1599, 4294901760
  %1601 = vmatmul.mubr.f32.gmra.mrb[0].mxu0 %v1600
  %v1602 = vpop.f32.mrb[0].mxu0
  %v1603 = vadd.f32 0.0, %v1602
  %v1604 = vpop.f32.mrb[0].mxu0
  %1605 = vdwg.mxu0
  %1606 = vmatprep.subr.mxu0 0.0
  %v1607 = vand.u32 %v1528, 4294901760
  %v1608 = vsub.f32 %v1528, %v1607
  %v1609 = vand.u32 %v1608, 4294901760
  %v1610 = vsub.f32 %v1608, %v1609
  %v1611 = vand.u32 %v1610, 4294901760
  %1612 = vmatpush1.msra.mxu0 %v1611
  %1613 = vmatprep.subr.mxu0 0.0
  %1614 = vmatpush1.msra.mxu0 0.0
  %1615 = vmatprep.subr.mxu0 0.0
  %1616 = vmatpush1.msra.mxu0 0.0
  %1617 = vmatprep.subr.mxu0 0.0
  %1618 = vmatpush1.msra.mxu0 0.0
  %1619 = vmatprep.subr.mxu0 0.0
  %1620 = vmatpush1.msra.mxu0 0.0
  %1621 = vmatprep.subr.mxu0 0.0
  %1622 = vmatpush1.msra.mxu0 0.0
  %1623 = vmatprep.subr.mxu0 0.0
  %1624 = vmatpush1.msra.mxu0 0.0
  %1625 = vmatprep.subr.mxu0 0.0
  %1626 = vmatpush1.msra.mxu0 0.0
  %1627 = vmatprep.subr.mxu0 0.0
  %1628 = vmatpush1.msra.mxu0 0.0
  %1629 = vmatprep.subr.mxu0 0.0
  %1630 = vmatpush1.msra.mxu0 0.0
  %1631 = vmatprep.subr.mxu0 0.0
  %1632 = vmatpush1.msra.mxu0 0.0
  %1633 = vmatprep.subr.mxu0 0.0
  %1634 = vmatpush1.msra.mxu0 0.0
  %1635 = vmatprep.subr.mxu0 0.0
  %1636 = vmatpush1.msra.mxu0 0.0
  %1637 = vmatprep.subr.mxu0 0.0
  %1638 = vmatpush1.msra.mxu0 0.0
  %1639 = vmatprep.subr.mxu0 0.0
  %1640 = vmatpush1.msra.mxu0 0.0
  %1641 = vmatprep.subr.mxu0 0.0
  %1642 = vmatpush1.msra.mxu0 0.0
  %1643 = vmatprep.subr.mxu0 0.0
  %1644 = vmatpush1.msra.mxu0 0.0
  %1645 = vmatprep.subr.mxu0 0.0
  %1646 = vmatpush1.msra.mxu0 0.0
  %1647 = vmatprep.subr.mxu0 0.0
  %1648 = vmatpush1.msra.mxu0 0.0
  %1649 = vmatprep.subr.mxu0 0.0
  %1650 = vmatpush1.msra.mxu0 0.0
  %1651 = vmatprep.subr.mxu0 0.0
  %1652 = vmatpush1.msra.mxu0 0.0
  %1653 = vmatprep.subr.mxu0 0.0
  %1654 = vmatpush1.msra.mxu0 0.0
  %1655 = vmatprep.subr.mxu0 0.0
  %1656 = vmatpush1.msra.mxu0 0.0
  %1657 = vmatprep.subr.mxu0 0.0
  %1658 = vmatpush1.msra.mxu0 0.0
  %1659 = vmatprep.subr.mxu0 0.0
  %1660 = vmatpush1.msra.mxu0 0.0
  %1661 = vmatprep.subr.mxu0 0.0
  %1662 = vmatpush1.msra.mxu0 0.0
  %1663 = vmatprep.subr.mxu0 0.0
  %1664 = vmatpush1.msra.mxu0 0.0
  %1665 = vmatprep.subr.mxu0 0.0
  %1666 = vmatpush1.msra.mxu0 0.0
  %1667 = vmatprep.subr.mxu0 0.0
  %1668 = vmatpush1.msra.mxu0 0.0
  %1669 = vmatprep.subr.mxu0 0.0
  %1670 = vmatpush1.msra.mxu0 0.0
  %1671 = vmatprep.subr.mxu0 0.0
  %1672 = vmatpush1.msra.mxu0 0.0
  %1673 = vmatprep.subr.mxu0 0.0
  %1674 = vmatpush1.msra.mxu0 0.0
  %1675 = vmatprep.mubr.f32.mxu0 0.0
  %v1676 = vand.u32 %v1525, 4294901760
  %1677 = vmatmul.mubr.f32.gmra.mrb[0].mxu0 %v1676
  %v1678 = vpop.f32.mrb[0].mxu0
  %v1679 = vadd.f32 %v1603, %v1678
  %v1680 = vpop.f32.mrb[0].mxu0
  %1681 = vdwg.mxu0
  %1682 = vmatprep.subr.mxu0 0.0
  %v1683 = vand.u32 %v1528, 4294901760
  %v1684 = vsub.f32 %v1528, %v1683
  %1685 = vmatpush1.msra.mxu0 %v1684
  %1686 = vmatprep.subr.mxu0 0.0
  %1687 = vmatpush1.msra.mxu0 0.0
  %1688 = vmatprep.subr.mxu0 0.0
  %1689 = vmatpush1.msra.mxu0 0.0
  %1690 = vmatprep.subr.mxu0 0.0
  %1691 = vmatpush1.msra.mxu0 0.0
  %1692 = vmatprep.subr.mxu0 0.0
  %1693 = vmatpush1.msra.mxu0 0.0
  %1694 = vmatprep.subr.mxu0 0.0
  %1695 = vmatpush1.msra.mxu0 0.0
  %1696 = vmatprep.subr.mxu0 0.0
  %1697 = vmatpush1.msra.mxu0 0.0
  %1698 = vmatprep.subr.mxu0 0.0
  %1699 = vmatpush1.msra.mxu0 0.0
  %1700 = vmatprep.subr.mxu0 0.0
  %1701 = vmatpush1.msra.mxu0 0.0
  %1702 = vmatprep.subr.mxu0 0.0
  %1703 = vmatpush1.msra.mxu0 0.0
  %1704 = vmatprep.subr.mxu0 0.0
  %1705 = vmatpush1.msra.mxu0 0.0
  %1706 = vmatprep.subr.mxu0 0.0
  %1707 = vmatpush1.msra.mxu0 0.0
  %1708 = vmatprep.subr.mxu0 0.0
  %1709 = vmatpush1.msra.mxu0 0.0
  %1710 = vmatprep.subr.mxu0 0.0
  %1711 = vmatpush1.msra.mxu0 0.0
  %1712 = vmatprep.subr.mxu0 0.0
  %1713 = vmatpush1.msra.mxu0 0.0
  %1714 = vmatprep.subr.mxu0 0.0
  %1715 = vmatpush1.msra.mxu0 0.0
  %1716 = vmatprep.subr.mxu0 0.0
  %1717 = vmatpush1.msra.mxu0 0.0
  %1718 = vmatprep.subr.mxu0 0.0
  %1719 = vmatpush1.msra.mxu0 0.0
  %1720 = vmatprep.subr.mxu0 0.0
  %1721 = vmatpush1.msra.mxu0 0.0
  %1722 = vmatprep.subr.mxu0 0.0
  %1723 = vmatpush1.msra.mxu0 0.0
  %1724 = vmatprep.subr.mxu0 0.0
  %1725 = vmatpush1.msra.mxu0 0.0
  %1726 = vmatprep.subr.mxu0 0.0
  %1727 = vmatpush1.msra.mxu0 0.0
  %1728 = vmatprep.subr.mxu0 0.0
  %1729 = vmatpush1.msra.mxu0 0.0
  %1730 = vmatprep.subr.mxu0 0.0
  %1731 = vmatpush1.msra.mxu0 0.0
  %1732 = vmatprep.subr.mxu0 0.0
  %1733 = vmatpush1.msra.mxu0 0.0
  %1734 = vmatprep.subr.mxu0 0.0
  %1735 = vmatpush1.msra.mxu0 0.0
  %1736 = vmatprep.subr.mxu0 0.0
  %1737 = vmatpush1.msra.mxu0 0.0
  %1738 = vmatprep.subr.mxu0 0.0
  %1739 = vmatpush1.msra.mxu0 0.0
  %1740 = vmatprep.subr.mxu0 0.0
  %1741 = vmatpush1.msra.mxu0 0.0
  %1742 = vmatprep.subr.mxu0 0.0
  %1743 = vmatpush1.msra.mxu0 0.0
  %1744 = vmatprep.subr.mxu0 0.0
  %1745 = vmatpush1.msra.mxu0 0.0
  %1746 = vmatprep.subr.mxu0 0.0
  %1747 = vmatpush1.msra.mxu0 0.0
  %1748 = vmatprep.mubr.f32.mxu0 0.0
  %v1749 = vand.u32 %v1525, 4294901760
  %v1750 = vsub.f32 %v1525, %v1749
  %1751 = vmatmul.mubr.f32.gmra.mrb[0].mxu0 %v1750
  %v1752 = vpop.f32.mrb[0].mxu0
  %v1753 = vadd.f32 %v1679, %v1752
  %v1754 = vpop.f32.mrb[0].mxu0
  %1755 = vdwg.mxu0
  %1756 = vmatprep.subr.mxu0 0.0
  %v1757 = vand.u32 %v1528, 4294901760
  %1758 = vmatpush1.msra.mxu0 %v1757
  %1759 = vmatprep.subr.mxu0 0.0
  %1760 = vmatpush1.msra.mxu0 0.0
  %1761 = vmatprep.subr.mxu0 0.0
  %1762 = vmatpush1.msra.mxu0 0.0
  %1763 = vmatprep.subr.mxu0 0.0
  %1764 = vmatpush1.msra.mxu0 0.0
  %1765 = vmatprep.subr.mxu0 0.0
  %1766 = vmatpush1.msra.mxu0 0.0
  %1767 = vmatprep.subr.mxu0 0.0
  %1768 = vmatpush1.msra.mxu0 0.0
  %1769 = vmatprep.subr.mxu0 0.0
  %1770 = vmatpush1.msra.mxu0 0.0
  %1771 = vmatprep.subr.mxu0 0.0
  %1772 = vmatpush1.msra.mxu0 0.0
  %1773 = vmatprep.subr.mxu0 0.0
  %1774 = vmatpush1.msra.mxu0 0.0
  %1775 = vmatprep.subr.mxu0 0.0
  %1776 = vmatpush1.msra.mxu0 0.0
  %1777 = vmatprep.subr.mxu0 0.0
  %1778 = vmatpush1.msra.mxu0 0.0
  %1779 = vmatprep.subr.mxu0 0.0
  %1780 = vmatpush1.msra.mxu0 0.0
  %1781 = vmatprep.subr.mxu0 0.0
  %1782 = vmatpush1.msra.mxu0 0.0
  %1783 = vmatprep.subr.mxu0 0.0
  %1784 = vmatpush1.msra.mxu0 0.0
  %1785 = vmatprep.subr.mxu0 0.0
  %1786 = vmatpush1.msra.mxu0 0.0
  %1787 = vmatprep.subr.mxu0 0.0
  %1788 = vmatpush1.msra.mxu0 0.0
  %1789 = vmatprep.subr.mxu0 0.0
  %1790 = vmatpush1.msra.mxu0 0.0
  %1791 = vmatprep.subr.mxu0 0.0
  %1792 = vmatpush1.msra.mxu0 0.0
  %1793 = vmatprep.subr.mxu0 0.0
  %1794 = vmatpush1.msra.mxu0 0.0
  %1795 = vmatprep.subr.mxu0 0.0
  %1796 = vmatpush1.msra.mxu0 0.0
  %1797 = vmatprep.subr.mxu0 0.0
  %1798 = vmatpush1.msra.mxu0 0.0
  %1799 = vmatprep.subr.mxu0 0.0
  %1800 = vmatpush1.msra.mxu0 0.0
  %1801 = vmatprep.subr.mxu0 0.0
  %1802 = vmatpush1.msra.mxu0 0.0
  %1803 = vmatprep.subr.mxu0 0.0
  %1804 = vmatpush1.msra.mxu0 0.0
  %1805 = vmatprep.subr.mxu0 0.0
  %1806 = vmatpush1.msra.mxu0 0.0
  %1807 = vmatprep.subr.mxu0 0.0
  %1808 = vmatpush1.msra.mxu0 0.0
  %1809 = vmatprep.subr.mxu0 0.0
  %1810 = vmatpush1.msra.mxu0 0.0
  %1811 = vmatprep.subr.mxu0 0.0
  %1812 = vmatpush1.msra.mxu0 0.0
  %1813 = vmatprep.subr.mxu0 0.0
  %1814 = vmatpush1.msra.mxu0 0.0
  %1815 = vmatprep.subr.mxu0 0.0
  %1816 = vmatpush1.msra.mxu0 0.0
  %1817 = vmatprep.subr.mxu0 0.0
  %1818 = vmatpush1.msra.mxu0 0.0
  %1819 = vmatprep.subr.mxu0 0.0
  %1820 = vmatpush1.msra.mxu0 0.0
  %1821 = vmatprep.mubr.f32.mxu0 0.0
  %v1822 = vand.u32 %v1525, 4294901760
  %v1823 = vsub.f32 %v1525, %v1822
  %v1824 = vand.u32 %v1823, 4294901760
  %1825 = vmatmul.mubr.f32.gmra.mrb[0].mxu0 %v1824
  %v1826 = vpop.f32.mrb[0].mxu0
  %v1827 = vadd.f32 %v1753, %v1826
  %v1828 = vpop.f32.mrb[0].mxu0
  %1829 = vdwg.mxu0
  %1830 = vmatprep.subr.mxu0 0.0
  %v1831 = vand.u32 %v1528, 4294901760
  %v1832 = vsub.f32 %v1528, %v1831
  %v1833 = vand.u32 %v1832, 4294901760
  %1834 = vmatpush1.msra.mxu0 %v1833
  %1835 = vmatprep.subr.mxu0 0.0
  %1836 = vmatpush1.msra.mxu0 0.0
  %1837 = vmatprep.subr.mxu0 0.0
  %1838 = vmatpush1.msra.mxu0 0.0
  %1839 = vmatprep.subr.mxu0 0.0
  %1840 = vmatpush1.msra.mxu0 0.0
  %1841 = vmatprep.subr.mxu0 0.0
  %1842 = vmatpush1.msra.mxu0 0.0
  %1843 = vmatprep.subr.mxu0 0.0
  %1844 = vmatpush1.msra.mxu0 0.0
  %1845 = vmatprep.subr.mxu0 0.0
  %1846 = vmatpush1.msra.mxu0 0.0
  %1847 = vmatprep.subr.mxu0 0.0
  %1848 = vmatpush1.msra.mxu0 0.0
  %1849 = vmatprep.subr.mxu0 0.0
  %1850 = vmatpush1.msra.mxu0 0.0
  %1851 = vmatprep.subr.mxu0 0.0
  %1852 = vmatpush1.msra.mxu0 0.0
  %1853 = vmatprep.subr.mxu0 0.0
  %1854 = vmatpush1.msra.mxu0 0.0
  %1855 = vmatprep.subr.mxu0 0.0
  %1856 = vmatpush1.msra.mxu0 0.0
  %1857 = vmatprep.subr.mxu0 0.0
  %1858 = vmatpush1.msra.mxu0 0.0
  %1859 = vmatprep.subr.mxu0 0.0
  %1860 = vmatpush1.msra.mxu0 0.0
  %1861 = vmatprep.subr.mxu0 0.0
  %1862 = vmatpush1.msra.mxu0 0.0
  %1863 = vmatprep.subr.mxu0 0.0
  %1864 = vmatpush1.msra.mxu0 0.0
  %1865 = vmatprep.subr.mxu0 0.0
  %1866 = vmatpush1.msra.mxu0 0.0
  %1867 = vmatprep.subr.mxu0 0.0
  %1868 = vmatpush1.msra.mxu0 0.0
  %1869 = vmatprep.subr.mxu0 0.0
  %1870 = vmatpush1.msra.mxu0 0.0
  %1871 = vmatprep.subr.mxu0 0.0
  %1872 = vmatpush1.msra.mxu0 0.0
  %1873 = vmatprep.subr.mxu0 0.0
  %1874 = vmatpush1.msra.mxu0 0.0
  %1875 = vmatprep.subr.mxu0 0.0
  %1876 = vmatpush1.msra.mxu0 0.0
  %1877 = vmatprep.subr.mxu0 0.0
  %1878 = vmatpush1.msra.mxu0 0.0
  %1879 = vmatprep.subr.mxu0 0.0
  %1880 = vmatpush1.msra.mxu0 0.0
  %1881 = vmatprep.subr.mxu0 0.0
  %1882 = vmatpush1.msra.mxu0 0.0
  %1883 = vmatprep.subr.mxu0 0.0
  %1884 = vmatpush1.msra.mxu0 0.0
  %1885 = vmatprep.subr.mxu0 0.0
  %1886 = vmatpush1.msra.mxu0 0.0
  %1887 = vmatprep.subr.mxu0 0.0
  %1888 = vmatpush1.msra.mxu0 0.0
  %1889 = vmatprep.subr.mxu0 0.0
  %1890 = vmatpush1.msra.mxu0 0.0
  %1891 = vmatprep.subr.mxu0 0.0
  %1892 = vmatpush1.msra.mxu0 0.0
  %1893 = vmatprep.subr.mxu0 0.0
  %1894 = vmatpush1.msra.mxu0 0.0
  %1895 = vmatprep.subr.mxu0 0.0
  %1896 = vmatpush1.msra.mxu0 0.0
  %1897 = vmatprep.mubr.f32.mxu0 0.0
  %v1898 = vand.u32 %v1525, 4294901760
  %1899 = vmatmul.mubr.f32.gmra.mrb[0].mxu0 %v1898
  %v1900 = vpop.f32.mrb[0].mxu0
  %v1901 = vadd.f32 %v1827, %v1900
  %v1902 = vpop.f32.mrb[0].mxu0
  %1903 = vdwg.mxu0
  %1904 = vmatprep.subr.mxu0 0.0
  %v1905 = vand.u32 %v1528, 4294901760
  %1906 = vmatpush1.msra.mxu0 %v1905
  %1907 = vmatprep.subr.mxu0 0.0
  %1908 = vmatpush1.msra.mxu0 0.0
  %1909 = vmatprep.subr.mxu0 0.0
  %1910 = vmatpush1.msra.mxu0 0.0
  %1911 = vmatprep.subr.mxu0 0.0
  %1912 = vmatpush1.msra.mxu0 0.0
  %1913 = vmatprep.subr.mxu0 0.0
  %1914 = vmatpush1.msra.mxu0 0.0
  %1915 = vmatprep.subr.mxu0 0.0
  %1916 = vmatpush1.msra.mxu0 0.0
  %1917 = vmatprep.subr.mxu0 0.0
  %1918 = vmatpush1.msra.mxu0 0.0
  %1919 = vmatprep.subr.mxu0 0.0
  %1920 = vmatpush1.msra.mxu0 0.0
  %1921 = vmatprep.subr.mxu0 0.0
  %1922 = vmatpush1.msra.mxu0 0.0
  %1923 = vmatprep.subr.mxu0 0.0
  %1924 = vmatpush1.msra.mxu0 0.0
  %1925 = vmatprep.subr.mxu0 0.0
  %1926 = vmatpush1.msra.mxu0 0.0
  %1927 = vmatprep.subr.mxu0 0.0
  %1928 = vmatpush1.msra.mxu0 0.0
  %1929 = vmatprep.subr.mxu0 0.0
  %1930 = vmatpush1.msra.mxu0 0.0
  %1931 = vmatprep.subr.mxu0 0.0
  %1932 = vmatpush1.msra.mxu0 0.0
  %1933 = vmatprep.subr.mxu0 0.0
  %1934 = vmatpush1.msra.mxu0 0.0
  %1935 = vmatprep.subr.mxu0 0.0
  %1936 = vmatpush1.msra.mxu0 0.0
  %1937 = vmatprep.subr.mxu0 0.0
  %1938 = vmatpush1.msra.mxu0 0.0
  %1939 = vmatprep.subr.mxu0 0.0
  %1940 = vmatpush1.msra.mxu0 0.0
  %1941 = vmatprep.subr.mxu0 0.0
  %1942 = vmatpush1.msra.mxu0 0.0
  %1943 = vmatprep.subr.mxu0 0.0
  %1944 = vmatpush1.msra.mxu0 0.0
  %1945 = vmatprep.subr.mxu0 0.0
  %1946 = vmatpush1.msra.mxu0 0.0
  %1947 = vmatprep.subr.mxu0 0.0
  %1948 = vmatpush1.msra.mxu0 0.0
  %1949 = vmatprep.subr.mxu0 0.0
  %1950 = vmatpush1.msra.mxu0 0.0
  %1951 = vmatprep.subr.mxu0 0.0
  %1952 = vmatpush1.msra.mxu0 0.0
  %1953 = vmatprep.subr.mxu0 0.0
  %1954 = vmatpush1.msra.mxu0 0.0
  %1955 = vmatprep.subr.mxu0 0.0
  %1956 = vmatpush1.msra.mxu0 0.0
  %1957 = vmatprep.subr.mxu0 0.0
  %1958 = vmatpush1.msra.mxu0 0.0
  %1959 = vmatprep.subr.mxu0 0.0
  %1960 = vmatpush1.msra.mxu0 0.0
  %1961 = vmatprep.subr.mxu0 0.0
  %1962 = vmatpush1.msra.mxu0 0.0
  %1963 = vmatprep.subr.mxu0 0.0
  %1964 = vmatpush1.msra.mxu0 0.0
  %1965 = vmatprep.subr.mxu0 0.0
  %1966 = vmatpush1.msra.mxu0 0.0
  %1967 = vmatprep.subr.mxu0 0.0
  %1968 = vmatpush1.msra.mxu0 0.0
  %1969 = vmatprep.mubr.f32.mxu0 0.0
  %v1970 = vand.u32 %v1525, 4294901760
  %1971 = vmatmul.mubr.f32.gmra.mrb[0].mxu0 %v1970
  %v1972 = vpop.f32.mrb[0].mxu0
  %v1973 = vadd.f32 %v1901, %v1972
  %v1974 = vpop.f32.mrb[0].mxu0
  %1975 = vdwg.mxu0
  %v1977 = vrot.slane %v22, 7
  %v1979 = vmul.f32 %v1973, %v1977
  %v1981 = vrot.slane %v1979, 1
  %v1983 = vmul.f32 %v1973, %v1981
  %v1984 = vsub.f32 %v23, %v1983
  %v1985 = vlaneseq
  %v1986 = vshrl.u32 %v1985, 7
  %v1987 = vsub.s32 1, %v1986
  %v1988 = vrot.slane %v1979, %v1987
  %v1989 = vmul.f32 %v807, %v1988
  %v1990 = vlaneseq
  %v1991 = vshrl.u32 %v1990, 7
  %v1992 = vsub.s32 0, %v1991
  %v1993 = vrot.slane %v1984, %v1992
  %v1994 = vadd.f32 %v1989, %v1993
  %vm1995 = vcmp.gt.f32.partialorder %v1994, 0.0
  %v1996 = vmul.f32 %v1994, 0.2
  %v1997 = vsel %vm1995, %v1994, %v1996
  %v1998 = vlaneseq
  %v1999 = vshrl.u32 %v1998, 7
  %v2000 = vsub.s32 0, %v1999
  %v2001 = vrot.slane %v24, %v2000
  %v2002 = vmul.f32 %v1997, %v2001
  %v2003 = vsel %vm808, %v2002, 0.0
  %2004 = vadd.xlane.f32.xlu0 %v2003
  %v2005 = vpop.xlane.xlu0 %2004
  %v2006 = vlaneseq
  %v2007 = vshrl.u32 %v2006, 7
  %v2008 = vsub.s32 0, %v2007
  %v2009 = vrot.slane %v25, %v2008
  %v2010 = vadd.f32 %v2005, %v2009
  %v2011 = vxor.u32 %v2010, 2147483648
  %v2012 = vmul.f32 %v2011, 1.442695
  %v2013 = vpow.pop %v2012
  %v2014 = vadd.f32 %v2013, 1.0
  %v2015 = vrcp.pop %v2014
  %v2016 = vmul.f32 1.0, %v2015
  %vm2017 = vcmask 1024
  %2018 = vst.msk [vmem:[%s5] sm:$0x3] %vm2017, %v2016
  // Predicated region
  $region22: #{tpu_custom_call.1} parent=0 // pred_check
    _
  $region23: #{tpu_custom_call.1} parent=0 // pred_check_branch
    %2020 = sbr.rel (0) target = $region25
  $region24: #{tpu_custom_call.1} parent=0 // pred_region
    _
  $region25: #{tpu_custom_call.1} parent=0 // pred_fallthru
    _
  // Predicated region
  $region26: #{tpu_custom_call.1} parent=0 // pred_check
    _
  $region27: #{tpu_custom_call.1} parent=0 // pred_check_branch
    %2022 = sbr.rel (0) target = $region29
  $region28: #{tpu_custom_call.1} parent=0 // pred_region
    _
  $region29: #{tpu_custom_call.1} parent=0 // pred_fallthru
    _

</llo_original>
